<compile_context>
chip_gen: v5e
topology: v5e:2x2
jax: 0.10.0
libtpu: 0.0.40
codegen_flags: <defaults>
</compile_context>

<pallas_src>
import numpy as np
import jax
import jax.numpy as jnp
from jax.experimental import pallas as pl
from jax.experimental.pallas import tpu as pltpu

# ---- synthetic BERT config (small) ----
VOCAB = 64
MAX_POS = 32
HIDDEN = 32
N_HEADS = 4
HEAD_DIM = HIDDEN // N_HEADS
INTER = 64
N_LAYERS = 2
SEQ = 8
BATCH = 2
LN_EPS = 1e-12
ROWS = BATCH * SEQ          # batch folded into the sublane axis
COLS = N_HEADS * ROWS       # flattened (head, batch*seq) key axis
NEG_BIG = -1e9              # cross-batch mask -> exp underflows to exactly 0
SCALE = 1.0 / (HEAD_DIM ** 0.5)


def _layernorm(x, g, b):
    mu = jnp.mean(x, axis=-1, keepdims=True)
    var = jnp.mean((x - mu) ** 2, axis=-1, keepdims=True)
    return (x - mu) * jax.lax.rsqrt(var + LN_EPS) * g + b


def _gelu(x):
    # TODO(synk): HF BERT default is exact (erf) GELU; erf has no clean Mosaic
    # lowering so the tanh approximation is used consistently here + reference.
    c = 0.7978845608028654  # sqrt(2/pi)
    return 0.5 * x * (1.0 + jnp.tanh(c * (x + 0.044715 * x * x * x)))


def bert_encoder_kernel(ids_ref, amask_ref, word_emb_ref, pos_type_ref,
                        emb_ln_ref, rep_ref, head_blk_ref,
                        mask_scale_ref, mask_bias_ref, pool_ref,
                        wq_ref, bq_ref, wk_ref, bk_ref, wv_ref, bv_ref,
                        wo_ref, bo_ref, attn_ln_ref,
                        w1_ref, b1_ref, w2_ref, b2_ref, ffn_ln_ref,
                        out_ref):
    f32 = jnp.float32

    # ---- embeddings: one-hot gather on the MXU (8 KB table, VMEM resident) ----
    # TODO(synk): at real vocab sizes (30522 x 768) replace with
    # PrefetchScalarGridSpec + pl.Element row gather / manual DMA gather.
    ids = ids_ref[...]                                            # (ROWS, 1) int32
    onehot = (ids == jax.lax.broadcasted_iota(jnp.int32, (ROWS, VOCAB), 1)
              ).astype(f32)                                       # (ROWS, VOCAB)
    x = jnp.dot(onehot, word_emb_ref[...], preferred_element_type=f32)
    x = x + pos_type_ref[...]                                     # pos + type_emb[0]
    x = _layernorm(x, emb_ln_ref[0], emb_ln_ref[1])

    # ---- additive attention mask (runtime amask; geometry hoisted to operands) ----
    # same-batch keys: (amask-1)*10000; cross-batch keys: -1e9 (exp -> exactly 0)
    add_mask = mask_scale_ref[...] * (amask_ref[...] - 1.0) + mask_bias_ref[...]

    rep = rep_ref[...]              # (COLS, ROWS)  sublane replicate matrix
    head_blk = head_blk_ref[...]    # (COLS, HIDDEN) block-diagonal head mask

    for l in range(N_LAYERS):
        # ---- self attention: all heads & batch rows, strictly 2-D ----
        q = (jnp.dot(x, wq_ref[l], preferred_element_type=f32) + bq_ref[l]) * SCALE
        k = jnp.dot(x, wk_ref[l], preferred_element_type=f32) + bk_ref[l]
        v = jnp.dot(x, wv_ref[l], preferred_element_type=f32) + bv_ref[l]

        # replicate K/V onto the flattened (head, batch*seq) sublane axis via the
        # MXU (replaces concatenate copies), zero cross-head lanes.
        k_big = jnp.dot(rep, k, preferred_element_type=f32) * head_blk   # (COLS, H)
        v_big = jnp.dot(rep, v, preferred_element_type=f32) * head_blk   # (COLS, H)

        s = jax.lax.dot_general(q, k_big, (((1,), (1,)), ((), ())),
                                preferred_element_type=f32) + add_mask   # (ROWS, COLS)
        # TODO(synk): global row max across head blocks is only safe while the
        # inter-head logit spread << 87 (f32 exp range); switch to a per-head-
        # block max before scaling to realistic weight magnitudes.
        s = s - jnp.max(s, axis=-1, keepdims=True)
        p = jnp.exp(s)

        # normalize AFTER the PV matmul: per-head denominators land lane-
        # replicated from one (ROWS, HIDDEN) matmul against head_blk.
        ctx = jnp.dot(p, v_big, preferred_element_type=f32)              # (ROWS, H)
        denom = jnp.dot(p, head_blk, preferred_element_type=f32)         # (ROWS, H)
        ctx = ctx * pl.reciprocal(denom, approx=True)

        attn_out = jnp.dot(ctx, wo_ref[l], preferred_element_type=f32) + bo_ref[l]
        x = _layernorm(x + attn_out, attn_ln_ref[l, 0], attn_ln_ref[l, 1])

        # ---- feed forward ----
        hmid = _gelu(jnp.dot(x, w1_ref[l], preferred_element_type=f32) + b1_ref[l])
        ffn_out = jnp.dot(hmid, w2_ref[l], preferred_element_type=f32) + b2_ref[l]
        x = _layernorm(x + ffn_out, ffn_ln_ref[l, 0], ffn_ln_ref[l, 1])

    # ---- mean pool over the sequence axis: one dense (B, H) store ----
    out_ref[...] = jnp.dot(pool_ref[...], x, preferred_element_type=f32)


def _constant_geometry():
    """Compile-time-constant masks, built once with numpy (hoisted out of the
    kernel prologue and DMA'd in the lone prefetch of the grid=(1,) kernel)."""
    col = np.arange(COLS)
    row = np.arange(ROWS)
    rep = (col[:, None] % ROWS == row[None, :]).astype(np.float32)          # (COLS, ROWS)
    head_blk = (col[:, None] // ROWS ==
                np.arange(HIDDEN)[None, :] // HEAD_DIM).astype(np.float32)  # (COLS, HIDDEN)
    same_batch = ((row[:, None] // SEQ) ==
                  ((col[None, :] % ROWS) // SEQ)).astype(np.float32)        # (ROWS, COLS)
    mask_scale = same_batch * 10000.0
    mask_bias = (1.0 - same_batch) * NEG_BIG
    pool = (np.arange(BATCH)[:, None] == row[None, :] // SEQ
            ).astype(np.float32) / SEQ                                      # (BATCH, ROWS)
    return (jnp.asarray(rep), jnp.asarray(head_blk), jnp.asarray(mask_scale),
            jnp.asarray(mask_bias), jnp.asarray(pool))


def bert_embed_forward(input_ids, attention_mask, params):
    B, S = input_ids.shape
    assert (B, S) == (BATCH, SEQ)
    ids_col = input_ids.reshape(ROWS, 1).astype(jnp.int32)
    # layout plumbing only: key-validity row tiled onto the flattened
    # (head, batch*seq) key axis so the kernel never lane-concatenates it.
    amask_tiled = jnp.tile(attention_mask.reshape(1, ROWS).astype(jnp.float32),
                           (1, N_HEADS))                                    # (1, COLS)

    rep, head_blk, mask_scale, mask_bias, pool = _constant_geometry()

    # Parameter prep (tiny one-time XLA ops outside the kernel): split the
    # fused QKV weights (removes in-kernel lane slices) and pre-combine the
    # position + token-type embedding bias for token_type_id = 0.
    pos_type = jnp.tile(params["pos_emb"][:SEQ] + params["type_emb"][0:1],
                        (BATCH, 1))                                         # (ROWS, H)
    wqkv, bqkv = params["wqkv"], params["bqkv"]
    wq, wk, wv = (wqkv[:, :, 0:HIDDEN], wqkv[:, :, HIDDEN:2 * HIDDEN],
                  wqkv[:, :, 2 * HIDDEN:3 * HIDDEN])
    bq, bk, bv = (bqkv[:, :, 0:HIDDEN], bqkv[:, :, HIDDEN:2 * HIDDEN],
                  bqkv[:, :, 2 * HIDDEN:3 * HIDDEN])

    operands = (ids_col, amask_tiled, params["word_emb"], pos_type,
                params["emb_ln"], rep, head_blk, mask_scale, mask_bias, pool,
                wq, bq, wk, bk, wv, bv,
                params["wo"], params["bo"], params["attn_ln"],
                params["w1"], params["b1"], params["w2"], params["b2"],
                params["ffn_ln"])

    def full_spec(arr):
        rank = arr.ndim
        return pl.BlockSpec(arr.shape, lambda i, _r=rank: (0,) * _r)

    # TODO(synk): at real BERT sizes (hidden=768, 12 layers) switch to a layer
    # grid axis streaming one layer's bf16 weights at a time (pl.Buffered(2),
    # per-layer tile <= ~16 MB so double-buffering fits v7x's 32 MiB scoped
    # VMEM), add a "parallel" batch/query-tile grid axis so v7x's second
    # TensorCore is used, and cast MXU operands to bf16 (keep LN/softmax f32).
    out = pl.pallas_call(
        bert_encoder_kernel,
        out_shape=jax.ShapeDtypeStruct((B, HIDDEN), jnp.float32),
        grid=(1,),
        in_specs=[full_spec(a) for a in operands],
        out_specs=pl.BlockSpec((B, HIDDEN), lambda i: (0, 0)),
        compiler_params=pltpu.CompilerParams(
            dimension_semantics=("arbitrary",)),
    )(*operands)

    return jnp.array(0, dtype=jnp.int32), out


def reference_forward(input_ids, attention_mask, params):
    """Pure-JAX reference of the same synthetic BERT (for correctness check)."""
    B, S = input_ids.shape
    pos = jnp.arange(S)
    x = (params["word_emb"][input_ids]
         + params["pos_emb"][pos][None, :, :]
         + params["type_emb"][0][None, None, :]).astype(jnp.float32)
    mask_add = ((1.0 - attention_mask.astype(jnp.float32)) * -10000.0)[:, None, None, :]
    x = _layernorm(x, params["emb_ln"][0], params["emb_ln"][1])
    scale = 1.0 / (HEAD_DIM ** 0.5)
    for l in range(N_LAYERS):
        qkv = x @ params["wqkv"][l] + params["bqkv"][l]
        q = qkv[..., 0:HIDDEN]
        k = qkv[..., HIDDEN:2 * HIDDEN]
        v = qkv[..., 2 * HIDDEN:3 * HIDDEN]
        qh = q.reshape(B, S, N_HEADS, HEAD_DIM).transpose(0, 2, 1, 3)
        kh = k.reshape(B, S, N_HEADS, HEAD_DIM).transpose(0, 2, 1, 3)
        vh = v.reshape(B, S, N_HEADS, HEAD_DIM).transpose(0, 2, 1, 3)
        s = jnp.einsum("bhqd,bhkd->bhqk", qh, kh) * scale + mask_add
        p = jax.nn.softmax(s, axis=-1)
        ctx = jnp.einsum("bhqk,bhkd->bhqd", p, vh).transpose(0, 2, 1, 3).reshape(B, S, HIDDEN)
        attn_out = ctx @ params["wo"][l] + params["bo"][l]
        x = _layernorm(x + attn_out, params["attn_ln"][l, 0], params["attn_ln"][l, 1])
        hmid = _gelu(x @ params["w1"][l] + params["b1"][l])
        x = _layernorm(x + hmid @ params["w2"][l] + params["b2"][l],
                       params["ffn_ln"][l, 0], params["ffn_ln"][l, 1])
    return jnp.mean(x, axis=1)


def init_params(key):
    std = 0.02
    ks = jax.random.split(key, 11)
    p = {}
    p["word_emb"] = std * jax.random.normal(ks[0], (VOCAB, HIDDEN), jnp.float32)
    p["pos_emb"] = std * jax.random.normal(ks[1], (MAX_POS, HIDDEN), jnp.float32)
    p["type_emb"] = std * jax.random.normal(ks[2], (2, HIDDEN), jnp.float32)
    p["emb_ln"] = jnp.stack([jnp.ones((1, HIDDEN), jnp.float32),
                             jnp.zeros((1, HIDDEN), jnp.float32)], axis=0)       # (2,1,H)
    p["wqkv"] = std * jax.random.normal(ks[3], (N_LAYERS, HIDDEN, 3 * HIDDEN), jnp.float32)
    p["bqkv"] = std * jax.random.normal(ks[4], (N_LAYERS, 1, 3 * HIDDEN), jnp.float32)
    p["wo"] = std * jax.random.normal(ks[5], (N_LAYERS, HIDDEN, HIDDEN), jnp.float32)
    p["bo"] = std * jax.random.normal(ks[6], (N_LAYERS, 1, HIDDEN), jnp.float32)
    p["attn_ln"] = jnp.stack([jnp.ones((N_LAYERS, 1, HIDDEN), jnp.float32),
                              jnp.zeros((N_LAYERS, 1, HIDDEN), jnp.float32)], axis=1)  # (L,2,1,H)
    p["w1"] = std * jax.random.normal(ks[7], (N_LAYERS, HIDDEN, INTER), jnp.float32)
    p["b1"] = std * jax.random.normal(ks[8], (N_LAYERS, 1, INTER), jnp.float32)
    p["w2"] = std * jax.random.normal(ks[9], (N_LAYERS, INTER, HIDDEN), jnp.float32)
    p["b2"] = std * jax.random.normal(ks[10], (N_LAYERS, 1, HIDDEN), jnp.float32)
    p["ffn_ln"] = jnp.stack([jnp.ones((N_LAYERS, 1, HIDDEN), jnp.float32),
                             jnp.zeros((N_LAYERS, 1, HIDDEN), jnp.float32)], axis=1)   # (L,2,1,H)
    return p


if __name__ == "__main__":
    key = jax.random.PRNGKey(0)
    pkey, ikey = jax.random.split(key)
    params = init_params(pkey)

    input_ids = jax.random.randint(ikey, (BATCH, SEQ), 0, VOCAB, dtype=jnp.int32)
    attention_mask = jnp.array([[1] * SEQ, [1] * 6 + [0] * 2], dtype=jnp.int32)

    code, mean_pool = bert_embed_forward(input_ids, attention_mask, params)
    mean_pool = jax.block_until_ready(mean_pool)

    ref = reference_forward(input_ids, attention_mask, params)
    assert mean_pool.shape == (BATCH, HIDDEN), mean_pool.shape
    assert int(code) == 0
    assert jnp.allclose(mean_pool, ref, atol=1e-4, rtol=1e-4), (
        float(jnp.max(jnp.abs(mean_pool - ref))))
    print("KERNEL_OK")
</pallas_src>

<mosaic_0001>
module attributes {stable_mosaic.version = 11 : i64} {
  func.func @bert_encoder_kernel(%arg0: i32, %arg1: memref<16x1xi32, #tpu.memory_space<vmem>>, %arg2: memref<1x64xf32, #tpu.memory_space<vmem>>, %arg3: memref<64x32xf32, #tpu.memory_space<vmem>>, %arg4: memref<16x32xf32, #tpu.memory_space<vmem>>, %arg5: memref<2x1x32xf32, #tpu.memory_space<vmem>>, %arg6: memref<64x16xf32, #tpu.memory_space<vmem>>, %arg7: memref<64x32xf32, #tpu.memory_space<vmem>>, %arg8: memref<16x64xf32, #tpu.memory_space<vmem>>, %arg9: memref<16x64xf32, #tpu.memory_space<vmem>>, %arg10: memref<2x16xf32, #tpu.memory_space<vmem>>, %arg11: memref<2x32x32xf32, #tpu.memory_space<vmem>>, %arg12: memref<2x1x32xf32, #tpu.memory_space<vmem>>, %arg13: memref<2x32x32xf32, #tpu.memory_space<vmem>>, %arg14: memref<2x1x32xf32, #tpu.memory_space<vmem>>, %arg15: memref<2x32x32xf32, #tpu.memory_space<vmem>>, %arg16: memref<2x1x32xf32, #tpu.memory_space<vmem>>, %arg17: memref<2x32x32xf32, #tpu.memory_space<vmem>>, %arg18: memref<2x1x32xf32, #tpu.memory_space<vmem>>, %arg19: memref<2x2x1x32xf32, #tpu.memory_space<vmem>>, %arg20: memref<2x32x64xf32, #tpu.memory_space<vmem>>, %arg21: memref<2x1x64xf32, #tpu.memory_space<vmem>>, %arg22: memref<2x64x32xf32, #tpu.memory_space<vmem>>, %arg23: memref<2x1x32xf32, #tpu.memory_space<vmem>>, %arg24: memref<2x2x1x32xf32, #tpu.memory_space<vmem>>, %arg25: memref<2x32xf32, #tpu.memory_space<vmem>>) attributes {dimension_semantics = [#tpu.dimension_semantics<arbitrary>], iteration_bounds = array<i64: 1>, scalar_prefetch = 0 : i64, scratch_operands = 0 : i64, tpu.core_type = #tpu.core_type<tc>, window_params = [{pipeline_mode = #tpu.pipeline_mode<synchronous>, transform_indices = @transform_0, window_bounds = array<i64: 16, 1>}, {pipeline_mode = #tpu.pipeline_mode<synchronous>, transform_indices = @transform_1, window_bounds = array<i64: 1, 64>}, {pipeline_mode = #tpu.pipeline_mode<synchronous>, transform_indices = @transform_2, window_bounds = array<i64: 64, 32>}, {pipeline_mode = #tpu.pipeline_mode<synchronous>, transform_indices = @transform_3, window_bounds = array<i64: 16, 32>}, {pipeline_mode = #tpu.pipeline_mode<synchronous>, transform_indices = @transform_4, window_bounds = array<i64: 2, 1, 32>}, {pipeline_mode = #tpu.pipeline_mode<synchronous>, transform_indices = @transform_5, window_bounds = array<i64: 64, 16>}, {pipeline_mode = #tpu.pipeline_mode<synchronous>, transform_indices = @transform_6, window_bounds = array<i64: 64, 32>}, {pipeline_mode = #tpu.pipeline_mode<synchronous>, transform_indices = @transform_7, window_bounds = array<i64: 16, 64>}, {pipeline_mode = #tpu.pipeline_mode<synchronous>, transform_indices = @transform_8, window_bounds = array<i64: 16, 64>}, {pipeline_mode = #tpu.pipeline_mode<synchronous>, transform_indices = @transform_9, window_bounds = array<i64: 2, 16>}, {pipeline_mode = #tpu.pipeline_mode<synchronous>, transform_indices = @transform_10, window_bounds = array<i64: 2, 32, 32>}, {pipeline_mode = #tpu.pipeline_mode<synchronous>, transform_indices = @transform_11, window_bounds = array<i64: 2, 1, 32>}, {pipeline_mode = #tpu.pipeline_mode<synchronous>, transform_indices = @transform_12, window_bounds = array<i64: 2, 32, 32>}, {pipeline_mode = #tpu.pipeline_mode<synchronous>, transform_indices = @transform_13, window_bounds = array<i64: 2, 1, 32>}, {pipeline_mode = #tpu.pipeline_mode<synchronous>, transform_indices = @transform_14, window_bounds = array<i64: 2, 32, 32>}, {pipeline_mode = #tpu.pipeline_mode<synchronous>, transform_indices = @transform_15, window_bounds = array<i64: 2, 1, 32>}, {pipeline_mode = #tpu.pipeline_mode<synchronous>, transform_indices = @transform_16, window_bounds = array<i64: 2, 32, 32>}, {pipeline_mode = #tpu.pipeline_mode<synchronous>, transform_indices = @transform_17, window_bounds = array<i64: 2, 1, 32>}, {pipeline_mode = #tpu.pipeline_mode<synchronous>, transform_indices = @transform_18, window_bounds = array<i64: 2, 2, 1, 32>}, {pipeline_mode = #tpu.pipeline_mode<synchronous>, transform_indices = @transform_19, window_bounds = array<i64: 2, 32, 64>}, {pipeline_mode = #tpu.pipeline_mode<synchronous>, transform_indices = @transform_20, window_bounds = array<i64: 2, 1, 64>}, {pipeline_mode = #tpu.pipeline_mode<synchronous>, transform_indices = @transform_21, window_bounds = array<i64: 2, 64, 32>}, {pipeline_mode = #tpu.pipeline_mode<synchronous>, transform_indices = @transform_22, window_bounds = array<i64: 2, 1, 32>}, {pipeline_mode = #tpu.pipeline_mode<synchronous>, transform_indices = @transform_23, window_bounds = array<i64: 2, 2, 1, 32>}, {pipeline_mode = #tpu.pipeline_mode<synchronous>, transform_indices = @transform_24, window_bounds = array<i64: 2, 32>}]} {
    %c0 = arith.constant 0 : index
    %c0_0 = arith.constant 0 : index
    %0 = vector.load %arg1[%c0, %c0_0] : memref<16x1xi32, #tpu.memory_space<vmem>>, vector<16x1xi32>
    %1 = tpu.iota {dimensions = array<i32: 1>} : vector<16x64xi32>
    %2 = vector.broadcast %0 : vector<16x1xi32> to vector<16x64xi32>
    %3 = arith.cmpi eq, %2, %1 : vector<16x64xi32>
    %4 = arith.extui %3 : vector<16x64xi1> to vector<16x64xi32>
    %5 = arith.sitofp %4 : vector<16x64xi32> to vector<16x64xf32>
    %c0_1 = arith.constant 0 : index
    %c0_2 = arith.constant 0 : index
    %6 = vector.load %arg3[%c0_1, %c0_2] : memref<64x32xf32, #tpu.memory_space<vmem>>, vector<64x32xf32>
    %cst = arith.constant dense<0.000000e+00> : vector<16x32xf32>
    %7 = tpu.matmul %5, %6, %cst {dimension_numbers = #tpu.dot_dimension_numbers<[1], [0], [0], [1], [0, 0, 1, 1], [], []>} : vector<16x64xf32>, vector<64x32xf32>, vector<16x32xf32> -> vector<16x32xf32>
    %c0_3 = arith.constant 0 : index
    %c0_4 = arith.constant 0 : index
    %8 = vector.load %arg4[%c0_3, %c0_4] : memref<16x32xf32, #tpu.memory_space<vmem>>, vector<16x32xf32>
    %9 = arith.addf %7, %8 : vector<16x32xf32>
    %c0_5 = arith.constant 0 : index
    %c0_6 = arith.constant 0 : index
    %c0_7 = arith.constant 0 : index
    %10 = vector.load %arg5[%c0_5, %c0_6, %c0_7] : memref<2x1x32xf32, #tpu.memory_space<vmem>>, vector<1x1x32xf32>
    %11 = vector.shape_cast %10 : vector<1x1x32xf32> to vector<1x32xf32>
    %c1 = arith.constant 1 : index
    %c0_8 = arith.constant 0 : index
    %c0_9 = arith.constant 0 : index
    %12 = vector.load %arg5[%c1, %c0_8, %c0_9] : memref<2x1x32xf32, #tpu.memory_space<vmem>>, vector<1x1x32xf32>
    %13 = vector.shape_cast %12 : vector<1x1x32xf32> to vector<1x32xf32>
    %cst_10 = arith.constant dense<0.000000e+00> : vector<16xf32>
    %14 = vector.multi_reduction <add>, %9, %cst_10 [1] : vector<16x32xf32> to vector<16xf32>
    %15 = vector.shape_cast %14 : vector<16xf32> to vector<16x1xf32>
    %cst_11 = arith.constant 3.200000e+01 : f32
    %16 = vector.broadcast %cst_11 : f32 to vector<16x1xf32>
    %17 = arith.divf %15, %16 : vector<16x1xf32>
    %18 = vector.broadcast %17 : vector<16x1xf32> to vector<16x32xf32>
    %19 = arith.subf %9, %18 : vector<16x32xf32>
    %20 = arith.mulf %19, %19 : vector<16x32xf32>
    %cst_12 = arith.constant dense<0.000000e+00> : vector<16xf32>
    %21 = vector.multi_reduction <add>, %20, %cst_12 [1] : vector<16x32xf32> to vector<16xf32>
    %22 = vector.shape_cast %21 : vector<16xf32> to vector<16x1xf32>
    %cst_13 = arith.constant 3.200000e+01 : f32
    %23 = vector.broadcast %cst_13 : f32 to vector<16x1xf32>
    %24 = arith.divf %22, %23 : vector<16x1xf32>
    %25 = vector.broadcast %17 : vector<16x1xf32> to vector<16x32xf32>
    %26 = arith.subf %9, %25 : vector<16x32xf32>
    %cst_14 = arith.constant 9.99999996E-13 : f32
    %27 = vector.broadcast %cst_14 : f32 to vector<16x1xf32>
    %28 = arith.addf %24, %27 : vector<16x1xf32>
    %29 = math.rsqrt %28 : vector<16x1xf32>
    %30 = vector.broadcast %29 : vector<16x1xf32> to vector<16x32xf32>
    %31 = arith.mulf %26, %30 : vector<16x32xf32>
    %32 = vector.broadcast %11 : vector<1x32xf32> to vector<16x32xf32>
    %33 = arith.mulf %31, %32 : vector<16x32xf32>
    %34 = vector.broadcast %13 : vector<1x32xf32> to vector<16x32xf32>
    %35 = arith.addf %33, %34 : vector<16x32xf32>
    %c0_15 = arith.constant 0 : index
    %c0_16 = arith.constant 0 : index
    %36 = vector.load %arg8[%c0_15, %c0_16] : memref<16x64xf32, #tpu.memory_space<vmem>>, vector<16x64xf32>
    %c0_17 = arith.constant 0 : index
    %c0_18 = arith.constant 0 : index
    %37 = vector.load %arg2[%c0_17, %c0_18] : memref<1x64xf32, #tpu.memory_space<vmem>>, vector<1x64xf32>
    %cst_19 = arith.constant 1.000000e+00 : f32
    %38 = vector.broadcast %cst_19 : f32 to vector<1x64xf32>
    %39 = arith.subf %37, %38 : vector<1x64xf32>
    %40 = vector.broadcast %39 : vector<1x64xf32> to vector<16x64xf32>
    %41 = arith.mulf %36, %40 : vector<16x64xf32>
    %c0_20 = arith.constant 0 : index
    %c0_21 = arith.constant 0 : index
    %42 = vector.load %arg9[%c0_20, %c0_21] : memref<16x64xf32, #tpu.memory_space<vmem>>, vector<16x64xf32>
    %43 = arith.addf %41, %42 : vector<16x64xf32>
    %c0_22 = arith.constant 0 : index
    %c0_23 = arith.constant 0 : index
    %44 = vector.load %arg6[%c0_22, %c0_23] : memref<64x16xf32, #tpu.memory_space<vmem>>, vector<64x16xf32>
    %c0_24 = arith.constant 0 : index
    %c0_25 = arith.constant 0 : index
    %45 = vector.load %arg7[%c0_24, %c0_25] : memref<64x32xf32, #tpu.memory_space<vmem>>, vector<64x32xf32>
    %c0_26 = arith.constant 0 : index
    %c0_27 = arith.constant 0 : index
    %c0_28 = arith.constant 0 : index
    %46 = vector.load %arg11[%c0_26, %c0_27, %c0_28] : memref<2x32x32xf32, #tpu.memory_space<vmem>>, vector<1x32x32xf32>
    %47 = vector.shape_cast %46 : vector<1x32x32xf32> to vector<32x32xf32>
    %cst_29 = arith.constant dense<0.000000e+00> : vector<16x32xf32>
    %48 = tpu.matmul %35, %47, %cst_29 {dimension_numbers = #tpu.dot_dimension_numbers<[1], [0], [0], [1], [0, 0, 1, 1], [], []>} : vector<16x32xf32>, vector<32x32xf32>, vector<16x32xf32> -> vector<16x32xf32>
    %c0_30 = arith.constant 0 : index
    %c0_31 = arith.constant 0 : index
    %c0_32 = arith.constant 0 : index
    %49 = vector.load %arg12[%c0_30, %c0_31, %c0_32] : memref<2x1x32xf32, #tpu.memory_space<vmem>>, vector<1x1x32xf32>
    %50 = vector.shape_cast %49 : vector<1x1x32xf32> to vector<1x32xf32>
    %51 = vector.broadcast %50 : vector<1x32xf32> to vector<16x32xf32>
    %52 = arith.addf %48, %51 : vector<16x32xf32>
    %cst_33 = arith.constant 0.353553385 : f32
    %53 = vector.broadcast %cst_33 : f32 to vector<16x32xf32>
    %54 = arith.mulf %52, %53 : vector<16x32xf32>
    %c0_34 = arith.constant 0 : index
    %c0_35 = arith.constant 0 : index
    %c0_36 = arith.constant 0 : index
    %55 = vector.load %arg13[%c0_34, %c0_35, %c0_36] : memref<2x32x32xf32, #tpu.memory_space<vmem>>, vector<1x32x32xf32>
    %56 = vector.shape_cast %55 : vector<1x32x32xf32> to vector<32x32xf32>
    %cst_37 = arith.constant dense<0.000000e+00> : vector<16x32xf32>
    %57 = tpu.matmul %35, %56, %cst_37 {dimension_numbers = #tpu.dot_dimension_numbers<[1], [0], [0], [1], [0, 0, 1, 1], [], []>} : vector<16x32xf32>, vector<32x32xf32>, vector<16x32xf32> -> vector<16x32xf32>
    %c0_38 = arith.constant 0 : index
    %c0_39 = arith.constant 0 : index
    %c0_40 = arith.constant 0 : index
    %58 = vector.load %arg14[%c0_38, %c0_39, %c0_40] : memref<2x1x32xf32, #tpu.memory_space<vmem>>, vector<1x1x32xf32>
    %59 = vector.shape_cast %58 : vector<1x1x32xf32> to vector<1x32xf32>
    %60 = vector.broadcast %59 : vector<1x32xf32> to vector<16x32xf32>
    %61 = arith.addf %57, %60 : vector<16x32xf32>
    %c0_41 = arith.constant 0 : index
    %c0_42 = arith.constant 0 : index
    %c0_43 = arith.constant 0 : index
    %62 = vector.load %arg15[%c0_41, %c0_42, %c0_43] : memref<2x32x32xf32, #tpu.memory_space<vmem>>, vector<1x32x32xf32>
    %63 = vector.shape_cast %62 : vector<1x32x32xf32> to vector<32x32xf32>
    %cst_44 = arith.constant dense<0.000000e+00> : vector<16x32xf32>
    %64 = tpu.matmul %35, %63, %cst_44 {dimension_numbers = #tpu.dot_dimension_numbers<[1], [0], [0], [1], [0, 0, 1, 1], [], []>} : vector<16x32xf32>, vector<32x32xf32>, vector<16x32xf32> -> vector<16x32xf32>
    %c0_45 = arith.constant 0 : index
    %c0_46 = arith.constant 0 : index
    %c0_47 = arith.constant 0 : index
    %65 = vector.load %arg16[%c0_45, %c0_46, %c0_47] : memref<2x1x32xf32, #tpu.memory_space<vmem>>, vector<1x1x32xf32>
    %66 = vector.shape_cast %65 : vector<1x1x32xf32> to vector<1x32xf32>
    %67 = vector.broadcast %66 : vector<1x32xf32> to vector<16x32xf32>
    %68 = arith.addf %64, %67 : vector<16x32xf32>
    %cst_48 = arith.constant dense<0.000000e+00> : vector<64x32xf32>
    %69 = tpu.matmul %44, %61, %cst_48 {dimension_numbers = #tpu.dot_dimension_numbers<[1], [0], [0], [1], [0, 0, 1, 1], [], []>} : vector<64x16xf32>, vector<16x32xf32>, vector<64x32xf32> -> vector<64x32xf32>
    %70 = arith.mulf %69, %45 : vector<64x32xf32>
    %cst_49 = arith.constant dense<0.000000e+00> : vector<64x32xf32>
    %71 = tpu.matmul %44, %68, %cst_49 {dimension_numbers = #tpu.dot_dimension_numbers<[1], [0], [0], [1], [0, 0, 1, 1], [], []>} : vector<64x16xf32>, vector<16x32xf32>, vector<64x32xf32> -> vector<64x32xf32>
    %72 = arith.mulf %71, %45 : vector<64x32xf32>
    %cst_50 = arith.constant dense<0.000000e+00> : vector<16x64xf32>
    %73 = tpu.matmul %54, %70, %cst_50 {dimension_numbers = #tpu.dot_dimension_numbers<[1], [1], [0], [0], [0, 0, 1, 0], [], []>} : vector<16x32xf32>, vector<64x32xf32>, vector<16x64xf32> -> vector<16x64xf32>
    %74 = arith.addf %73, %43 : vector<16x64xf32>
    %cst_51 = arith.constant dense<0xFF800000> : vector<16xf32>
    %75 = vector.multi_reduction <maximumf>, %74, %cst_51 [1] : vector<16x64xf32> to vector<16xf32>
    %76 = vector.shape_cast %75 : vector<16xf32> to vector<16x1xf32>
    %77 = vector.broadcast %76 : vector<16x1xf32> to vector<16x64xf32>
    %78 = arith.subf %74, %77 : vector<16x64xf32>
    %79 = math.exp %78 : vector<16x64xf32>
    %cst_52 = arith.constant dense<0.000000e+00> : vector<16x32xf32>
    %80 = tpu.matmul %79, %72, %cst_52 {dimension_numbers = #tpu.dot_dimension_numbers<[1], [0], [0], [1], [0, 0, 1, 1], [], []>} : vector<16x64xf32>, vector<64x32xf32>, vector<16x32xf32> -> vector<16x32xf32>
    %cst_53 = arith.constant dense<0.000000e+00> : vector<16x32xf32>
    %81 = tpu.matmul %79, %45, %cst_53 {dimension_numbers = #tpu.dot_dimension_numbers<[1], [0], [0], [1], [0, 0, 1, 1], [], []>} : vector<16x64xf32>, vector<64x32xf32>, vector<16x32xf32> -> vector<16x32xf32>
    %82 = tpu.reciprocal %81 {approx = true} : vector<16x32xf32> -> vector<16x32xf32>
    %83 = arith.mulf %80, %82 : vector<16x32xf32>
    %c0_54 = arith.constant 0 : index
    %c0_55 = arith.constant 0 : index
    %c0_56 = arith.constant 0 : index
    %84 = vector.load %arg17[%c0_54, %c0_55, %c0_56] : memref<2x32x32xf32, #tpu.memory_space<vmem>>, vector<1x32x32xf32>
    %85 = vector.shape_cast %84 : vector<1x32x32xf32> to vector<32x32xf32>
    %cst_57 = arith.constant dense<0.000000e+00> : vector<16x32xf32>
    %86 = tpu.matmul %83, %85, %cst_57 {dimension_numbers = #tpu.dot_dimension_numbers<[1], [0], [0], [1], [0, 0, 1, 1], [], []>} : vector<16x32xf32>, vector<32x32xf32>, vector<16x32xf32> -> vector<16x32xf32>
    %c0_58 = arith.constant 0 : index
    %c0_59 = arith.constant 0 : index
    %c0_60 = arith.constant 0 : index
    %87 = vector.load %arg18[%c0_58, %c0_59, %c0_60] : memref<2x1x32xf32, #tpu.memory_space<vmem>>, vector<1x1x32xf32>
    %88 = vector.shape_cast %87 : vector<1x1x32xf32> to vector<1x32xf32>
    %89 = vector.broadcast %88 : vector<1x32xf32> to vector<16x32xf32>
    %90 = arith.addf %86, %89 : vector<16x32xf32>
    %91 = arith.addf %35, %90 : vector<16x32xf32>
    %c0_61 = arith.constant 0 : index
    %c0_62 = arith.constant 0 : index
    %c0_63 = arith.constant 0 : index
    %c0_64 = arith.constant 0 : index
    %92 = vector.load %arg19[%c0_61, %c0_62, %c0_63, %c0_64] : memref<2x2x1x32xf32, #tpu.memory_space<vmem>>, vector<1x1x1x32xf32>
    %93 = vector.shape_cast %92 : vector<1x1x1x32xf32> to vector<1x32xf32>
    %c0_65 = arith.constant 0 : index
    %c1_66 = arith.constant 1 : index
    %c0_67 = arith.constant 0 : index
    %c0_68 = arith.constant 0 : index
    %94 = vector.load %arg19[%c0_65, %c1_66, %c0_67, %c0_68] : memref<2x2x1x32xf32, #tpu.memory_space<vmem>>, vector<1x1x1x32xf32>
    %95 = vector.shape_cast %94 : vector<1x1x1x32xf32> to vector<1x32xf32>
    %cst_69 = arith.constant dense<0.000000e+00> : vector<16xf32>
    %96 = vector.multi_reduction <add>, %91, %cst_69 [1] : vector<16x32xf32> to vector<16xf32>
    %97 = vector.shape_cast %96 : vector<16xf32> to vector<16x1xf32>
    %cst_70 = arith.constant 3.200000e+01 : f32
    %98 = vector.broadcast %cst_70 : f32 to vector<16x1xf32>
    %99 = arith.divf %97, %98 : vector<16x1xf32>
    %100 = vector.broadcast %99 : vector<16x1xf32> to vector<16x32xf32>
    %101 = arith.subf %91, %100 : vector<16x32xf32>
    %102 = arith.mulf %101, %101 : vector<16x32xf32>
    %cst_71 = arith.constant dense<0.000000e+00> : vector<16xf32>
    %103 = vector.multi_reduction <add>, %102, %cst_71 [1] : vector<16x32xf32> to vector<16xf32>
    %104 = vector.shape_cast %103 : vector<16xf32> to vector<16x1xf32>
    %cst_72 = arith.constant 3.200000e+01 : f32
    %105 = vector.broadcast %cst_72 : f32 to vector<16x1xf32>
    %106 = arith.divf %104, %105 : vector<16x1xf32>
    %107 = vector.broadcast %99 : vector<16x1xf32> to vector<16x32xf32>
    %108 = arith.subf %91, %107 : vector<16x32xf32>
    %cst_73 = arith.constant 9.99999996E-13 : f32
    %109 = vector.broadcast %cst_73 : f32 to vector<16x1xf32>
    %110 = arith.addf %106, %109 : vector<16x1xf32>
    %111 = math.rsqrt %110 : vector<16x1xf32>
    %112 = vector.broadcast %111 : vector<16x1xf32> to vector<16x32xf32>
    %113 = arith.mulf %108, %112 : vector<16x32xf32>
    %114 = vector.broadcast %93 : vector<1x32xf32> to vector<16x32xf32>
    %115 = arith.mulf %113, %114 : vector<16x32xf32>
    %116 = vector.broadcast %95 : vector<1x32xf32> to vector<16x32xf32>
    %117 = arith.addf %115, %116 : vector<16x32xf32>
    %c0_74 = arith.constant 0 : index
    %c0_75 = arith.constant 0 : index
    %c0_76 = arith.constant 0 : index
    %118 = vector.load %arg20[%c0_74, %c0_75, %c0_76] : memref<2x32x64xf32, #tpu.memory_space<vmem>>, vector<1x32x64xf32>
    %119 = vector.shape_cast %118 : vector<1x32x64xf32> to vector<32x64xf32>
    %cst_77 = arith.constant dense<0.000000e+00> : vector<16x64xf32>
    %120 = tpu.matmul %117, %119, %cst_77 {dimension_numbers = #tpu.dot_dimension_numbers<[1], [0], [0], [1], [0, 0, 1, 1], [], []>} : vector<16x32xf32>, vector<32x64xf32>, vector<16x64xf32> -> vector<16x64xf32>
    %c0_78 = arith.constant 0 : index
    %c0_79 = arith.constant 0 : index
    %c0_80 = arith.constant 0 : index
    %121 = vector.load %arg21[%c0_78, %c0_79, %c0_80] : memref<2x1x64xf32, #tpu.memory_space<vmem>>, vector<1x1x64xf32>
    %122 = vector.shape_cast %121 : vector<1x1x64xf32> to vector<1x64xf32>
    %123 = vector.broadcast %122 : vector<1x64xf32> to vector<16x64xf32>
    %124 = arith.addf %120, %123 : vector<16x64xf32>
    %cst_81 = arith.constant 5.000000e-01 : f32
    %125 = vector.broadcast %cst_81 : f32 to vector<16x64xf32>
    %126 = arith.mulf %125, %124 : vector<16x64xf32>
    %cst_82 = arith.constant 4.471500e-02 : f32
    %127 = vector.broadcast %cst_82 : f32 to vector<16x64xf32>
    %128 = arith.mulf %127, %124 : vector<16x64xf32>
    %129 = arith.mulf %128, %124 : vector<16x64xf32>
    %130 = arith.mulf %129, %124 : vector<16x64xf32>
    %131 = arith.addf %124, %130 : vector<16x64xf32>
    %cst_83 = arith.constant 0.797884583 : f32
    %132 = vector.broadcast %cst_83 : f32 to vector<16x64xf32>
    %133 = arith.mulf %132, %131 : vector<16x64xf32>
    %134 = math.tanh %133 : vector<16x64xf32>
    %cst_84 = arith.constant 1.000000e+00 : f32
    %135 = vector.broadcast %cst_84 : f32 to vector<16x64xf32>
    %136 = arith.addf %135, %134 : vector<16x64xf32>
    %137 = arith.mulf %126, %136 : vector<16x64xf32>
    %c0_85 = arith.constant 0 : index
    %c0_86 = arith.constant 0 : index
    %c0_87 = arith.constant 0 : index
    %138 = vector.load %arg22[%c0_85, %c0_86, %c0_87] : memref<2x64x32xf32, #tpu.memory_space<vmem>>, vector<1x64x32xf32>
    %139 = vector.shape_cast %138 : vector<1x64x32xf32> to vector<64x32xf32>
    %cst_88 = arith.constant dense<0.000000e+00> : vector<16x32xf32>
    %140 = tpu.matmul %137, %139, %cst_88 {dimension_numbers = #tpu.dot_dimension_numbers<[1], [0], [0], [1], [0, 0, 1, 1], [], []>} : vector<16x64xf32>, vector<64x32xf32>, vector<16x32xf32> -> vector<16x32xf32>
    %c0_89 = arith.constant 0 : index
    %c0_90 = arith.constant 0 : index
    %c0_91 = arith.constant 0 : index
    %141 = vector.load %arg23[%c0_89, %c0_90, %c0_91] : memref<2x1x32xf32, #tpu.memory_space<vmem>>, vector<1x1x32xf32>
    %142 = vector.shape_cast %141 : vector<1x1x32xf32> to vector<1x32xf32>
    %143 = vector.broadcast %142 : vector<1x32xf32> to vector<16x32xf32>
    %144 = arith.addf %140, %143 : vector<16x32xf32>
    %145 = arith.addf %117, %144 : vector<16x32xf32>
    %c0_92 = arith.constant 0 : index
    %c0_93 = arith.constant 0 : index
    %c0_94 = arith.constant 0 : index
    %c0_95 = arith.constant 0 : index
    %146 = vector.load %arg24[%c0_92, %c0_93, %c0_94, %c0_95] : memref<2x2x1x32xf32, #tpu.memory_space<vmem>>, vector<1x1x1x32xf32>
    %147 = vector.shape_cast %146 : vector<1x1x1x32xf32> to vector<1x32xf32>
    %c0_96 = arith.constant 0 : index
    %c1_97 = arith.constant 1 : index
    %c0_98 = arith.constant 0 : index
    %c0_99 = arith.constant 0 : index
    %148 = vector.load %arg24[%c0_96, %c1_97, %c0_98, %c0_99] : memref<2x2x1x32xf32, #tpu.memory_space<vmem>>, vector<1x1x1x32xf32>
    %149 = vector.shape_cast %148 : vector<1x1x1x32xf32> to vector<1x32xf32>
    %cst_100 = arith.constant dense<0.000000e+00> : vector<16xf32>
    %150 = vector.multi_reduction <add>, %145, %cst_100 [1] : vector<16x32xf32> to vector<16xf32>
    %151 = vector.shape_cast %150 : vector<16xf32> to vector<16x1xf32>
    %cst_101 = arith.constant 3.200000e+01 : f32
    %152 = vector.broadcast %cst_101 : f32 to vector<16x1xf32>
    %153 = arith.divf %151, %152 : vector<16x1xf32>
    %154 = vector.broadcast %153 : vector<16x1xf32> to vector<16x32xf32>
    %155 = arith.subf %145, %154 : vector<16x32xf32>
    %156 = arith.mulf %155, %155 : vector<16x32xf32>
    %cst_102 = arith.constant dense<0.000000e+00> : vector<16xf32>
    %157 = vector.multi_reduction <add>, %156, %cst_102 [1] : vector<16x32xf32> to vector<16xf32>
    %158 = vector.shape_cast %157 : vector<16xf32> to vector<16x1xf32>
    %cst_103 = arith.constant 3.200000e+01 : f32
    %159 = vector.broadcast %cst_103 : f32 to vector<16x1xf32>
    %160 = arith.divf %158, %159 : vector<16x1xf32>
    %161 = vector.broadcast %153 : vector<16x1xf32> to vector<16x32xf32>
    %162 = arith.subf %145, %161 : vector<16x32xf32>
    %cst_104 = arith.constant 9.99999996E-13 : f32
    %163 = vector.broadcast %cst_104 : f32 to vector<16x1xf32>
    %164 = arith.addf %160, %163 : vector<16x1xf32>
    %165 = math.rsqrt %164 : vector<16x1xf32>
    %166 = vector.broadcast %165 : vector<16x1xf32> to vector<16x32xf32>
    %167 = arith.mulf %162, %166 : vector<16x32xf32>
    %168 = vector.broadcast %147 : vector<1x32xf32> to vector<16x32xf32>
    %169 = arith.mulf %167, %168 : vector<16x32xf32>
    %170 = vector.broadcast %149 : vector<1x32xf32> to vector<16x32xf32>
    %171 = arith.addf %169, %170 : vector<16x32xf32>
    %c1_105 = arith.constant 1 : index
    %c0_106 = arith.constant 0 : index
    %c0_107 = arith.constant 0 : index
    %172 = vector.load %arg11[%c1_105, %c0_106, %c0_107] : memref<2x32x32xf32, #tpu.memory_space<vmem>>, vector<1x32x32xf32>
    %173 = vector.shape_cast %172 : vector<1x32x32xf32> to vector<32x32xf32>
    %cst_108 = arith.constant dense<0.000000e+00> : vector<16x32xf32>
    %174 = tpu.matmul %171, %173, %cst_108 {dimension_numbers = #tpu.dot_dimension_numbers<[1], [0], [0], [1], [0, 0, 1, 1], [], []>} : vector<16x32xf32>, vector<32x32xf32>, vector<16x32xf32> -> vector<16x32xf32>
    %c1_109 = arith.constant 1 : index
    %c0_110 = arith.constant 0 : index
    %c0_111 = arith.constant 0 : index
    %175 = vector.load %arg12[%c1_109, %c0_110, %c0_111] : memref<2x1x32xf32, #tpu.memory_space<vmem>>, vector<1x1x32xf32>
    %176 = vector.shape_cast %175 : vector<1x1x32xf32> to vector<1x32xf32>
    %177 = vector.broadcast %176 : vector<1x32xf32> to vector<16x32xf32>
    %178 = arith.addf %174, %177 : vector<16x32xf32>
    %cst_112 = arith.constant 0.353553385 : f32
    %179 = vector.broadcast %cst_112 : f32 to vector<16x32xf32>
    %180 = arith.mulf %178, %179 : vector<16x32xf32>
    %c1_113 = arith.constant 1 : index
    %c0_114 = arith.constant 0 : index
    %c0_115 = arith.constant 0 : index
    %181 = vector.load %arg13[%c1_113, %c0_114, %c0_115] : memref<2x32x32xf32, #tpu.memory_space<vmem>>, vector<1x32x32xf32>
    %182 = vector.shape_cast %181 : vector<1x32x32xf32> to vector<32x32xf32>
    %cst_116 = arith.constant dense<0.000000e+00> : vector<16x32xf32>
    %183 = tpu.matmul %171, %182, %cst_116 {dimension_numbers = #tpu.dot_dimension_numbers<[1], [0], [0], [1], [0, 0, 1, 1], [], []>} : vector<16x32xf32>, vector<32x32xf32>, vector<16x32xf32> -> vector<16x32xf32>
    %c1_117 = arith.constant 1 : index
    %c0_118 = arith.constant 0 : index
    %c0_119 = arith.constant 0 : index
    %184 = vector.load %arg14[%c1_117, %c0_118, %c0_119] : memref<2x1x32xf32, #tpu.memory_space<vmem>>, vector<1x1x32xf32>
    %185 = vector.shape_cast %184 : vector<1x1x32xf32> to vector<1x32xf32>
    %186 = vector.broadcast %185 : vector<1x32xf32> to vector<16x32xf32>
    %187 = arith.addf %183, %186 : vector<16x32xf32>
    %c1_120 = arith.constant 1 : index
    %c0_121 = arith.constant 0 : index
    %c0_122 = arith.constant 0 : index
    %188 = vector.load %arg15[%c1_120, %c0_121, %c0_122] : memref<2x32x32xf32, #tpu.memory_space<vmem>>, vector<1x32x32xf32>
    %189 = vector.shape_cast %188 : vector<1x32x32xf32> to vector<32x32xf32>
    %cst_123 = arith.constant dense<0.000000e+00> : vector<16x32xf32>
    %190 = tpu.matmul %171, %189, %cst_123 {dimension_numbers = #tpu.dot_dimension_numbers<[1], [0], [0], [1], [0, 0, 1, 1], [], []>} : vector<16x32xf32>, vector<32x32xf32>, vector<16x32xf32> -> vector<16x32xf32>
    %c1_124 = arith.constant 1 : index
    %c0_125 = arith.constant 0 : index
    %c0_126 = arith.constant 0 : index
    %191 = vector.load %arg16[%c1_124, %c0_125, %c0_126] : memref<2x1x32xf32, #tpu.memory_space<vmem>>, vector<1x1x32xf32>
    %192 = vector.shape_cast %191 : vector<1x1x32xf32> to vector<1x32xf32>
    %193 = vector.broadcast %192 : vector<1x32xf32> to vector<16x32xf32>
    %194 = arith.addf %190, %193 : vector<16x32xf32>
    %cst_127 = arith.constant dense<0.000000e+00> : vector<64x32xf32>
    %195 = tpu.matmul %44, %187, %cst_127 {dimension_numbers = #tpu.dot_dimension_numbers<[1], [0], [0], [1], [0, 0, 1, 1], [], []>} : vector<64x16xf32>, vector<16x32xf32>, vector<64x32xf32> -> vector<64x32xf32>
    %196 = arith.mulf %195, %45 : vector<64x32xf32>
    %cst_128 = arith.constant dense<0.000000e+00> : vector<64x32xf32>
    %197 = tpu.matmul %44, %194, %cst_128 {dimension_numbers = #tpu.dot_dimension_numbers<[1], [0], [0], [1], [0, 0, 1, 1], [], []>} : vector<64x16xf32>, vector<16x32xf32>, vector<64x32xf32> -> vector<64x32xf32>
    %198 = arith.mulf %197, %45 : vector<64x32xf32>
    %cst_129 = arith.constant dense<0.000000e+00> : vector<16x64xf32>
    %199 = tpu.matmul %180, %196, %cst_129 {dimension_numbers = #tpu.dot_dimension_numbers<[1], [1], [0], [0], [0, 0, 1, 0], [], []>} : vector<16x32xf32>, vector<64x32xf32>, vector<16x64xf32> -> vector<16x64xf32>
    %200 = arith.addf %199, %43 : vector<16x64xf32>
    %cst_130 = arith.constant dense<0xFF800000> : vector<16xf32>
    %201 = vector.multi_reduction <maximumf>, %200, %cst_130 [1] : vector<16x64xf32> to vector<16xf32>
    %202 = vector.shape_cast %201 : vector<16xf32> to vector<16x1xf32>
    %203 = vector.broadcast %202 : vector<16x1xf32> to vector<16x64xf32>
    %204 = arith.subf %200, %203 : vector<16x64xf32>
    %205 = math.exp %204 : vector<16x64xf32>
    %cst_131 = arith.constant dense<0.000000e+00> : vector<16x32xf32>
    %206 = tpu.matmul %205, %198, %cst_131 {dimension_numbers = #tpu.dot_dimension_numbers<[1], [0], [0], [1], [0, 0, 1, 1], [], []>} : vector<16x64xf32>, vector<64x32xf32>, vector<16x32xf32> -> vector<16x32xf32>
    %cst_132 = arith.constant dense<0.000000e+00> : vector<16x32xf32>
    %207 = tpu.matmul %205, %45, %cst_132 {dimension_numbers = #tpu.dot_dimension_numbers<[1], [0], [0], [1], [0, 0, 1, 1], [], []>} : vector<16x64xf32>, vector<64x32xf32>, vector<16x32xf32> -> vector<16x32xf32>
    %208 = tpu.reciprocal %207 {approx = true} : vector<16x32xf32> -> vector<16x32xf32>
    %209 = arith.mulf %206, %208 : vector<16x32xf32>
    %c1_133 = arith.constant 1 : index
    %c0_134 = arith.constant 0 : index
    %c0_135 = arith.constant 0 : index
    %210 = vector.load %arg17[%c1_133, %c0_134, %c0_135] : memref<2x32x32xf32, #tpu.memory_space<vmem>>, vector<1x32x32xf32>
    %211 = vector.shape_cast %210 : vector<1x32x32xf32> to vector<32x32xf32>
    %cst_136 = arith.constant dense<0.000000e+00> : vector<16x32xf32>
    %212 = tpu.matmul %209, %211, %cst_136 {dimension_numbers = #tpu.dot_dimension_numbers<[1], [0], [0], [1], [0, 0, 1, 1], [], []>} : vector<16x32xf32>, vector<32x32xf32>, vector<16x32xf32> -> vector<16x32xf32>
    %c1_137 = arith.constant 1 : index
    %c0_138 = arith.constant 0 : index
    %c0_139 = arith.constant 0 : index
    %213 = vector.load %arg18[%c1_137, %c0_138, %c0_139] : memref<2x1x32xf32, #tpu.memory_space<vmem>>, vector<1x1x32xf32>
    %214 = vector.shape_cast %213 : vector<1x1x32xf32> to vector<1x32xf32>
    %215 = vector.broadcast %214 : vector<1x32xf32> to vector<16x32xf32>
    %216 = arith.addf %212, %215 : vector<16x32xf32>
    %217 = arith.addf %171, %216 : vector<16x32xf32>
    %c1_140 = arith.constant 1 : index
    %c0_141 = arith.constant 0 : index
    %c0_142 = arith.constant 0 : index
    %c0_143 = arith.constant 0 : index
    %218 = vector.load %arg19[%c1_140, %c0_141, %c0_142, %c0_143] : memref<2x2x1x32xf32, #tpu.memory_space<vmem>>, vector<1x1x1x32xf32>
    %219 = vector.shape_cast %218 : vector<1x1x1x32xf32> to vector<1x32xf32>
    %c1_144 = arith.constant 1 : index
    %c1_145 = arith.constant 1 : index
    %c0_146 = arith.constant 0 : index
    %c0_147 = arith.constant 0 : index
    %220 = vector.load %arg19[%c1_144, %c1_145, %c0_146, %c0_147] : memref<2x2x1x32xf32, #tpu.memory_space<vmem>>, vector<1x1x1x32xf32>
    %221 = vector.shape_cast %220 : vector<1x1x1x32xf32> to vector<1x32xf32>
    %cst_148 = arith.constant dense<0.000000e+00> : vector<16xf32>
    %222 = vector.multi_reduction <add>, %217, %cst_148 [1] : vector<16x32xf32> to vector<16xf32>
    %223 = vector.shape_cast %222 : vector<16xf32> to vector<16x1xf32>
    %cst_149 = arith.constant 3.200000e+01 : f32
    %224 = vector.broadcast %cst_149 : f32 to vector<16x1xf32>
    %225 = arith.divf %223, %224 : vector<16x1xf32>
    %226 = vector.broadcast %225 : vector<16x1xf32> to vector<16x32xf32>
    %227 = arith.subf %217, %226 : vector<16x32xf32>
    %228 = arith.mulf %227, %227 : vector<16x32xf32>
    %cst_150 = arith.constant dense<0.000000e+00> : vector<16xf32>
    %229 = vector.multi_reduction <add>, %228, %cst_150 [1] : vector<16x32xf32> to vector<16xf32>
    %230 = vector.shape_cast %229 : vector<16xf32> to vector<16x1xf32>
    %cst_151 = arith.constant 3.200000e+01 : f32
    %231 = vector.broadcast %cst_151 : f32 to vector<16x1xf32>
    %232 = arith.divf %230, %231 : vector<16x1xf32>
    %233 = vector.broadcast %225 : vector<16x1xf32> to vector<16x32xf32>
    %234 = arith.subf %217, %233 : vector<16x32xf32>
    %cst_152 = arith.constant 9.99999996E-13 : f32
    %235 = vector.broadcast %cst_152 : f32 to vector<16x1xf32>
    %236 = arith.addf %232, %235 : vector<16x1xf32>
    %237 = math.rsqrt %236 : vector<16x1xf32>
    %238 = vector.broadcast %237 : vector<16x1xf32> to vector<16x32xf32>
    %239 = arith.mulf %234, %238 : vector<16x32xf32>
    %240 = vector.broadcast %219 : vector<1x32xf32> to vector<16x32xf32>
    %241 = arith.mulf %239, %240 : vector<16x32xf32>
    %242 = vector.broadcast %221 : vector<1x32xf32> to vector<16x32xf32>
    %243 = arith.addf %241, %242 : vector<16x32xf32>
    %c1_153 = arith.constant 1 : index
    %c0_154 = arith.constant 0 : index
    %c0_155 = arith.constant 0 : index
    %244 = vector.load %arg20[%c1_153, %c0_154, %c0_155] : memref<2x32x64xf32, #tpu.memory_space<vmem>>, vector<1x32x64xf32>
    %245 = vector.shape_cast %244 : vector<1x32x64xf32> to vector<32x64xf32>
    %cst_156 = arith.constant dense<0.000000e+00> : vector<16x64xf32>
    %246 = tpu.matmul %243, %245, %cst_156 {dimension_numbers = #tpu.dot_dimension_numbers<[1], [0], [0], [1], [0, 0, 1, 1], [], []>} : vector<16x32xf32>, vector<32x64xf32>, vector<16x64xf32> -> vector<16x64xf32>
    %c1_157 = arith.constant 1 : index
    %c0_158 = arith.constant 0 : index
    %c0_159 = arith.constant 0 : index
    %247 = vector.load %arg21[%c1_157, %c0_158, %c0_159] : memref<2x1x64xf32, #tpu.memory_space<vmem>>, vector<1x1x64xf32>
    %248 = vector.shape_cast %247 : vector<1x1x64xf32> to vector<1x64xf32>
    %249 = vector.broadcast %248 : vector<1x64xf32> to vector<16x64xf32>
    %250 = arith.addf %246, %249 : vector<16x64xf32>
    %cst_160 = arith.constant 5.000000e-01 : f32
    %251 = vector.broadcast %cst_160 : f32 to vector<16x64xf32>
    %252 = arith.mulf %251, %250 : vector<16x64xf32>
    %cst_161 = arith.constant 4.471500e-02 : f32
    %253 = vector.broadcast %cst_161 : f32 to vector<16x64xf32>
    %254 = arith.mulf %253, %250 : vector<16x64xf32>
    %255 = arith.mulf %254, %250 : vector<16x64xf32>
    %256 = arith.mulf %255, %250 : vector<16x64xf32>
    %257 = arith.addf %250, %256 : vector<16x64xf32>
    %cst_162 = arith.constant 0.797884583 : f32
    %258 = vector.broadcast %cst_162 : f32 to vector<16x64xf32>
    %259 = arith.mulf %258, %257 : vector<16x64xf32>
    %260 = math.tanh %259 : vector<16x64xf32>
    %cst_163 = arith.constant 1.000000e+00 : f32
    %261 = vector.broadcast %cst_163 : f32 to vector<16x64xf32>
    %262 = arith.addf %261, %260 : vector<16x64xf32>
    %263 = arith.mulf %252, %262 : vector<16x64xf32>
    %c1_164 = arith.constant 1 : index
    %c0_165 = arith.constant 0 : index
    %c0_166 = arith.constant 0 : index
    %264 = vector.load %arg22[%c1_164, %c0_165, %c0_166] : memref<2x64x32xf32, #tpu.memory_space<vmem>>, vector<1x64x32xf32>
    %265 = vector.shape_cast %264 : vector<1x64x32xf32> to vector<64x32xf32>
    %cst_167 = arith.constant dense<0.000000e+00> : vector<16x32xf32>
    %266 = tpu.matmul %263, %265, %cst_167 {dimension_numbers = #tpu.dot_dimension_numbers<[1], [0], [0], [1], [0, 0, 1, 1], [], []>} : vector<16x64xf32>, vector<64x32xf32>, vector<16x32xf32> -> vector<16x32xf32>
    %c1_168 = arith.constant 1 : index
    %c0_169 = arith.constant 0 : index
    %c0_170 = arith.constant 0 : index
    %267 = vector.load %arg23[%c1_168, %c0_169, %c0_170] : memref<2x1x32xf32, #tpu.memory_space<vmem>>, vector<1x1x32xf32>
    %268 = vector.shape_cast %267 : vector<1x1x32xf32> to vector<1x32xf32>
    %269 = vector.broadcast %268 : vector<1x32xf32> to vector<16x32xf32>
    %270 = arith.addf %266, %269 : vector<16x32xf32>
    %271 = arith.addf %243, %270 : vector<16x32xf32>
    %c1_171 = arith.constant 1 : index
    %c0_172 = arith.constant 0 : index
    %c0_173 = arith.constant 0 : index
    %c0_174 = arith.constant 0 : index
    %272 = vector.load %arg24[%c1_171, %c0_172, %c0_173, %c0_174] : memref<2x2x1x32xf32, #tpu.memory_space<vmem>>, vector<1x1x1x32xf32>
    %273 = vector.shape_cast %272 : vector<1x1x1x32xf32> to vector<1x32xf32>
    %c1_175 = arith.constant 1 : index
    %c1_176 = arith.constant 1 : index
    %c0_177 = arith.constant 0 : index
    %c0_178 = arith.constant 0 : index
    %274 = vector.load %arg24[%c1_175, %c1_176, %c0_177, %c0_178] : memref<2x2x1x32xf32, #tpu.memory_space<vmem>>, vector<1x1x1x32xf32>
    %275 = vector.shape_cast %274 : vector<1x1x1x32xf32> to vector<1x32xf32>
    %cst_179 = arith.constant dense<0.000000e+00> : vector<16xf32>
    %276 = vector.multi_reduction <add>, %271, %cst_179 [1] : vector<16x32xf32> to vector<16xf32>
    %277 = vector.shape_cast %276 : vector<16xf32> to vector<16x1xf32>
    %cst_180 = arith.constant 3.200000e+01 : f32
    %278 = vector.broadcast %cst_180 : f32 to vector<16x1xf32>
    %279 = arith.divf %277, %278 : vector<16x1xf32>
    %280 = vector.broadcast %279 : vector<16x1xf32> to vector<16x32xf32>
    %281 = arith.subf %271, %280 : vector<16x32xf32>
    %282 = arith.mulf %281, %281 : vector<16x32xf32>
    %cst_181 = arith.constant dense<0.000000e+00> : vector<16xf32>
    %283 = vector.multi_reduction <add>, %282, %cst_181 [1] : vector<16x32xf32> to vector<16xf32>
    %284 = vector.shape_cast %283 : vector<16xf32> to vector<16x1xf32>
    %cst_182 = arith.constant 3.200000e+01 : f32
    %285 = vector.broadcast %cst_182 : f32 to vector<16x1xf32>
    %286 = arith.divf %284, %285 : vector<16x1xf32>
    %287 = vector.broadcast %279 : vector<16x1xf32> to vector<16x32xf32>
    %288 = arith.subf %271, %287 : vector<16x32xf32>
    %cst_183 = arith.constant 9.99999996E-13 : f32
    %289 = vector.broadcast %cst_183 : f32 to vector<16x1xf32>
    %290 = arith.addf %286, %289 : vector<16x1xf32>
    %291 = math.rsqrt %290 : vector<16x1xf32>
    %292 = vector.broadcast %291 : vector<16x1xf32> to vector<16x32xf32>
    %293 = arith.mulf %288, %292 : vector<16x32xf32>
    %294 = vector.broadcast %273 : vector<1x32xf32> to vector<16x32xf32>
    %295 = arith.mulf %293, %294 : vector<16x32xf32>
    %296 = vector.broadcast %275 : vector<1x32xf32> to vector<16x32xf32>
    %297 = arith.addf %295, %296 : vector<16x32xf32>
    %c0_184 = arith.constant 0 : index
    %c0_185 = arith.constant 0 : index
    %298 = vector.load %arg10[%c0_184, %c0_185] : memref<2x16xf32, #tpu.memory_space<vmem>>, vector<2x16xf32>
    %cst_186 = arith.constant dense<0.000000e+00> : vector<2x32xf32>
    %299 = tpu.matmul %298, %297, %cst_186 {dimension_numbers = #tpu.dot_dimension_numbers<[1], [0], [0], [1], [0, 0, 1, 1], [], []>} : vector<2x16xf32>, vector<16x32xf32>, vector<2x32xf32> -> vector<2x32xf32>
    %c0_187 = arith.constant 0 : index
    %c0_188 = arith.constant 0 : index
    %300 = vector.load %arg25[%c0_187, %c0_188] : memref<2x32xf32, #tpu.memory_space<vmem>>, vector<2x32xf32>
    tpu.vector_store %arg25[%c0_187, %c0_188], %299 {strides = array<i32>} : memref<2x32xf32, #tpu.memory_space<vmem>>, vector<2x32xf32>,
    return
  }
  func.func @transform_0(%arg0: i32) -> (i32, i32) {
    %c0_i32 = arith.constant 0 : i32
    %c0_i32_0 = arith.constant 0 : i32
    %c0_i32_1 = arith.constant 0 : i32
    return %c0_i32, %c0_i32_0 : i32, i32
  }
  func.func @transform_1(%arg0: i32) -> (i32, i32) {
    %c0_i32 = arith.constant 0 : i32
    %c0_i32_0 = arith.constant 0 : i32
    %c0_i32_1 = arith.constant 0 : i32
    return %c0_i32, %c0_i32_0 : i32, i32
  }
  func.func @transform_2(%arg0: i32) -> (i32, i32) {
    %c0_i32 = arith.constant 0 : i32
    %c0_i32_0 = arith.constant 0 : i32
    %c0_i32_1 = arith.constant 0 : i32
    return %c0_i32, %c0_i32_0 : i32, i32
  }
  func.func @transform_3(%arg0: i32) -> (i32, i32) {
    %c0_i32 = arith.constant 0 : i32
    %c0_i32_0 = arith.constant 0 : i32
    %c0_i32_1 = arith.constant 0 : i32
    return %c0_i32, %c0_i32_0 : i32, i32
  }
  func.func @transform_4(%arg0: i32) -> (i32, i32, i32) {
    %c0_i32 = arith.constant 0 : i32
    %c0_i32_0 = arith.constant 0 : i32
    %c0_i32_1 = arith.constant 0 : i32
    %c0_i32_2 = arith.constant 0 : i32
    return %c0_i32, %c0_i32_0, %c0_i32_1 : i32, i32, i32
  }
  func.func @transform_5(%arg0: i32) -> (i32, i32) {
    %c0_i32 = arith.constant 0 : i32
    %c0_i32_0 = arith.constant 0 : i32
    %c0_i32_1 = arith.constant 0 : i32
    return %c0_i32, %c0_i32_0 : i32, i32
  }
  func.func @transform_6(%arg0: i32) -> (i32, i32) {
    %c0_i32 = arith.constant 0 : i32
    %c0_i32_0 = arith.constant 0 : i32
    %c0_i32_1 = arith.constant 0 : i32
    return %c0_i32, %c0_i32_0 : i32, i32
  }
  func.func @transform_7(%arg0: i32) -> (i32, i32) {
    %c0_i32 = arith.constant 0 : i32
    %c0_i32_0 = arith.constant 0 : i32
    %c0_i32_1 = arith.constant 0 : i32
    return %c0_i32, %c0_i32_0 : i32, i32
  }
  func.func @transform_8(%arg0: i32) -> (i32, i32) {
    %c0_i32 = arith.constant 0 : i32
    %c0_i32_0 = arith.constant 0 : i32
    %c0_i32_1 = arith.constant 0 : i32
    return %c0_i32, %c0_i32_0 : i32, i32
  }
  func.func @transform_9(%arg0: i32) -> (i32, i32) {
    %c0_i32 = arith.constant 0 : i32
    %c0_i32_0 = arith.constant 0 : i32
    %c0_i32_1 = arith.constant 0 : i32
    return %c0_i32, %c0_i32_0 : i32, i32
  }
  func.func @transform_10(%arg0: i32) -> (i32, i32, i32) {
    %c0_i32 = arith.constant 0 : i32
    %c0_i32_0 = arith.constant 0 : i32
    %c0_i32_1 = arith.constant 0 : i32
    %c0_i32_2 = arith.constant 0 : i32
    return %c0_i32, %c0_i32_0, %c0_i32_1 : i32, i32, i32
  }
  func.func @transform_11(%arg0: i32) -> (i32, i32, i32) {
    %c0_i32 = arith.constant 0 : i32
    %c0_i32_0 = arith.constant 0 : i32
    %c0_i32_1 = arith.constant 0 : i32
    %c0_i32_2 = arith.constant 0 : i32
    return %c0_i32, %c0_i32_0, %c0_i32_1 : i32, i32, i32
  }
  func.func @transform_12(%arg0: i32) -> (i32, i32, i32) {
    %c0_i32 = arith.constant 0 : i32
    %c0_i32_0 = arith.constant 0 : i32
    %c0_i32_1 = arith.constant 0 : i32
    %c0_i32_2 = arith.constant 0 : i32
    return %c0_i32, %c0_i32_0, %c0_i32_1 : i32, i32, i32
  }
  func.func @transform_13(%arg0: i32) -> (i32, i32, i32) {
    %c0_i32 = arith.constant 0 : i32
    %c0_i32_0 = arith.constant 0 : i32
    %c0_i32_1 = arith.constant 0 : i32
    %c0_i32_2 = arith.constant 0 : i32
    return %c0_i32, %c0_i32_0, %c0_i32_1 : i32, i32, i32
  }
  func.func @transform_14(%arg0: i32) -> (i32, i32, i32) {
    %c0_i32 = arith.constant 0 : i32
    %c0_i32_0 = arith.constant 0 : i32
    %c0_i32_1 = arith.constant 0 : i32
    %c0_i32_2 = arith.constant 0 : i32
    return %c0_i32, %c0_i32_0, %c0_i32_1 : i32, i32, i32
  }
  func.func @transform_15(%arg0: i32) -> (i32, i32, i32) {
    %c0_i32 = arith.constant 0 : i32
    %c0_i32_0 = arith.constant 0 : i32
    %c0_i32_1 = arith.constant 0 : i32
    %c0_i32_2 = arith.constant 0 : i32
    return %c0_i32, %c0_i32_0, %c0_i32_1 : i32, i32, i32
  }
  func.func @transform_16(%arg0: i32) -> (i32, i32, i32) {
    %c0_i32 = arith.constant 0 : i32
    %c0_i32_0 = arith.constant 0 : i32
    %c0_i32_1 = arith.constant 0 : i32
    %c0_i32_2 = arith.constant 0 : i32
    return %c0_i32, %c0_i32_0, %c0_i32_1 : i32, i32, i32
  }
  func.func @transform_17(%arg0: i32) -> (i32, i32, i32) {
    %c0_i32 = arith.constant 0 : i32
    %c0_i32_0 = arith.constant 0 : i32
    %c0_i32_1 = arith.constant 0 : i32
    %c0_i32_2 = arith.constant 0 : i32
    return %c0_i32, %c0_i32_0, %c0_i32_1 : i32, i32, i32
  }
  func.func @transform_18(%arg0: i32) -> (i32, i32, i32, i32) {
    %c0_i32 = arith.constant 0 : i32
    %c0_i32_0 = arith.constant 0 : i32
    %c0_i32_1 = arith.constant 0 : i32
    %c0_i32_2 = arith.constant 0 : i32
    %c0_i32_3 = arith.constant 0 : i32
    return %c0_i32, %c0_i32_0, %c0_i32_1, %c0_i32_2 : i32, i32, i32, i32
  }
  func.func @transform_19(%arg0: i32) -> (i32, i32, i32) {
    %c0_i32 = arith.constant 0 : i32
    %c0_i32_0 = arith.constant 0 : i32
    %c0_i32_1 = arith.constant 0 : i32
    %c0_i32_2 = arith.constant 0 : i32
    return %c0_i32, %c0_i32_0, %c0_i32_1 : i32, i32, i32
  }
  func.func @transform_20(%arg0: i32) -> (i32, i32, i32) {
    %c0_i32 = arith.constant 0 : i32
    %c0_i32_0 = arith.constant 0 : i32
    %c0_i32_1 = arith.constant 0 : i32
    %c0_i32_2 = arith.constant 0 : i32
    return %c0_i32, %c0_i32_0, %c0_i32_1 : i32, i32, i32
  }
  func.func @transform_21(%arg0: i32) -> (i32, i32, i32) {
    %c0_i32 = arith.constant 0 : i32
    %c0_i32_0 = arith.constant 0 : i32
    %c0_i32_1 = arith.constant 0 : i32
    %c0_i32_2 = arith.constant 0 : i32
    return %c0_i32, %c0_i32_0, %c0_i32_1 : i32, i32, i32
  }
  func.func @transform_22(%arg0: i32) -> (i32, i32, i32) {
    %c0_i32 = arith.constant 0 : i32
    %c0_i32_0 = arith.constant 0 : i32
    %c0_i32_1 = arith.constant 0 : i32
    %c0_i32_2 = arith.constant 0 : i32
    return %c0_i32, %c0_i32_0, %c0_i32_1 : i32, i32, i32
  }
  func.func @transform_23(%arg0: i32) -> (i32, i32, i32, i32) {
    %c0_i32 = arith.constant 0 : i32
    %c0_i32_0 = arith.constant 0 : i32
    %c0_i32_1 = arith.constant 0 : i32
    %c0_i32_2 = arith.constant 0 : i32
    %c0_i32_3 = arith.constant 0 : i32
    return %c0_i32, %c0_i32_0, %c0_i32_1, %c0_i32_2 : i32, i32, i32, i32
  }
  func.func @transform_24(%arg0: i32) -> (i32, i32) {
    %c0_i32 = arith.constant 0 : i32
    %c0_i32_0 = arith.constant 0 : i32
    %c0_i32_1 = arith.constant 0 : i32
    return %c0_i32, %c0_i32_0 : i32, i32
  }
}

</mosaic_0001>

<llo_original>
// kernel: tpu_custom_call.1
$region0: #{tpu_custom_call.1}
  #allocation0 [shape = 'u32[]', space=smem, size = 0x4, offset = 0x4, fixed_abs, tag = 'smem constant byte address 0x4 - core index']
  #allocation1 [shape = 'u32[72,128]{1,0:T(1,128)}', space=vmem, size = 0x9000, scoped, tag = 'internal scratch']
  %s0 = inlined_call_operand.vmem [shape: s32[16,1], index: 0, kind: input, shape index: {}]
  %s1 = inlined_call_operand.hbm [shape: f32[1,64], index: 1, kind: input, shape index: {}]
  %s2 = inlined_call_operand.vmem [shape: f32[64,32], index: 2, kind: input, shape index: {}]
  %s3 = inlined_call_operand.vmem [shape: f32[16,32], index: 3, kind: input, shape index: {}]
  %s4 = inlined_call_operand.hbm [shape: f32[2,1,32], index: 4, kind: input, shape index: {}]
  %s5 = inlined_call_operand.vmem [shape: f32[64,16], index: 5, kind: input, shape index: {}]
  %s6 = inlined_call_operand.vmem [shape: f32[64,32], index: 6, kind: input, shape index: {}]
  %s7 = inlined_call_operand.vmem [shape: f32[16,64], index: 7, kind: input, shape index: {}]
  %s8 = inlined_call_operand.vmem [shape: f32[16,64], index: 8, kind: input, shape index: {}]
  %s9 = inlined_call_operand.vmem [shape: f32[2,16], index: 9, kind: input, shape index: {}]
  %s10 = inlined_call_operand.vmem [shape: f32[2,32,32], index: 10, kind: input, shape index: {}]
  %s11 = inlined_call_operand.hbm [shape: f32[2,1,32], index: 11, kind: input, shape index: {}]
  %s12 = inlined_call_operand.vmem [shape: f32[2,32,32], index: 12, kind: input, shape index: {}]
  %s13 = inlined_call_operand.vmem [shape: f32[2,1,32], index: 13, kind: input, shape index: {}]
  %s14 = inlined_call_operand.vmem [shape: f32[2,32,32], index: 14, kind: input, shape index: {}]
  %s15 = inlined_call_operand.hbm [shape: f32[2,1,32], index: 15, kind: input, shape index: {}]
  %s16 = inlined_call_operand.vmem [shape: f32[2,32,32], index: 16, kind: input, shape index: {}]
  %s17 = inlined_call_operand.hbm [shape: f32[2,1,32], index: 17, kind: input, shape index: {}]
  %s18 = inlined_call_operand.vmem [shape: f32[2,2,1,32], index: 18, kind: input, shape index: {}]
  %s19 = inlined_call_operand.vmem [shape: f32[2,32,64], index: 19, kind: input, shape index: {}]
  %s20 = inlined_call_operand.vmem [shape: f32[2,1,64], index: 20, kind: input, shape index: {}]
  %s21 = inlined_call_operand.vmem [shape: f32[2,64,32], index: 21, kind: input, shape index: {}]
  %s22 = inlined_call_operand.vmem [shape: f32[2,1,32], index: 22, kind: input, shape index: {}]
  %s23 = inlined_call_operand.vmem [shape: f32[2,2,1,32], index: 23, kind: input, shape index: {}]
  %s24 = inlined_call_operand.hbm [shape: f32[2,32], index: 24, kind: output, shape index: {}]
  %s25 = sld [smem:[#allocation0]]
  $region126: #{tpu_custom_call.1} parent=0
    _
  %s27 = ssub.s32 1, %s25
  %s28 = scalar_select 0, %s27, %s25
  $region1: #{tpu_custom_call.1} parent=0
    #allocation2 [shape = 'u8[512]{0}', space=vmem, size = 0x400, scoped, tag = 'input window, operand 1, single buffered']
    #allocation3 [shape = 's32[1]{0}', space=sflag, size = 0x4, scoped, tag = 'scoped memory for tpu_custom_call.1']
    #allocation4 [shape = 's32[1]{0}', space=sflag, size = 0x4, scoped, tag = 'scoped memory for tpu_custom_call.1']
    #allocation5 [shape = 'u8[1024]{0}', space=vmem, size = 0x400, scoped, tag = 'input window, operand 4, single buffered']
    #allocation6 [shape = 's32[1]{0}', space=sflag, size = 0x4, scoped, tag = 'scoped memory for tpu_custom_call.1']
    #allocation7 [shape = 'u8[1024]{0}', space=vmem, size = 0x400, scoped, tag = 'input window, operand 11, single buffered']
    #allocation8 [shape = 'u8[1024]{0}', space=vmem, size = 0x400, scoped, tag = 'input window, operand 15, single buffered']
    #allocation9 [shape = 's32[1]{0}', space=sflag, size = 0x4, scoped, tag = 'scoped memory for tpu_custom_call.1']
    #allocation10 [shape = 'u8[1024]{0}', space=vmem, size = 0x400, scoped, tag = 'input window, operand 17, single buffered']
    #allocation11 [shape = 'u8[1024]{0}', space=vmem, size = 0x400, scoped, tag = 'output window, operand 0, single buffered']
    %29 = vsyncpa [#allocation3], 0
    %30 = vsyncpa [#allocation6], 0
    %31 = vsyncpa [#allocation9], 0
    %32 = vsyncpa [#allocation4], 0
    // Predicated region
    $region2: #{tpu_custom_call.1} parent=1 // pred_check
      _
    $region3: #{tpu_custom_call.1} parent=1 // pred_check_branch
      %34 = sbr.rel (0) target = $region5
    $region4: #{tpu_custom_call.1} parent=1 // pred_region
      _
    $region5: #{tpu_custom_call.1} parent=1 // pred_fallthru
      _
    // Predicated region
    $region6: #{tpu_custom_call.1} parent=1 // pred_check
      _
    $region7: #{tpu_custom_call.1} parent=1 // pred_check_branch
      %36 = sbr.rel (0) target = $region9
    $region8: #{tpu_custom_call.1} parent=1 // pred_region
      %38 = vsyncadd [#allocation3], 0
      %s40 = sshll.u32 %s1, 4
      %s41 = int_to_ptr.hbm [resolvable:$true] %s40
      %s42 = sshll.u32 [#allocation2], 4
      %s43 = int_to_ptr.vmem [resolvable:$true] %s42
      %45 = dma.hbm_to_vmem [thread:$0]  %s41, 16, %s43, [#allocation3]
    $region9: #{tpu_custom_call.1} parent=1 // pred_fallthru
      _
    // Predicated region
    $region10: #{tpu_custom_call.1} parent=1 // pred_check
      _
    $region11: #{tpu_custom_call.1} parent=1 // pred_check_branch
      %47 = sbr.rel (0) target = $region13
    $region12: #{tpu_custom_call.1} parent=1 // pred_region
      _
    $region13: #{tpu_custom_call.1} parent=1 // pred_fallthru
      _
    // Predicated region
    $region14: #{tpu_custom_call.1} parent=1 // pred_check
      _
    $region15: #{tpu_custom_call.1} parent=1 // pred_check_branch
      %49 = sbr.rel (0) target = $region17
    $region16: #{tpu_custom_call.1} parent=1 // pred_region
      _
    $region17: #{tpu_custom_call.1} parent=1 // pred_fallthru
      _
    // Predicated region
    $region18: #{tpu_custom_call.1} parent=1 // pred_check
      _
    $region19: #{tpu_custom_call.1} parent=1 // pred_check_branch
      %51 = sbr.rel (0) target = $region21
    $region20: #{tpu_custom_call.1} parent=1 // pred_region
      %53 = vsyncadd [#allocation6], 0
      %s54 = sshll.u32 %s4, 4
      %s55 = int_to_ptr.hbm [resolvable:$true] %s54
      %s56 = sshll.u32 [#allocation5], 4
      %s57 = int_to_ptr.vmem [resolvable:$true] %s56
      %62 = dma.hbm_to_vmem [thread:$0]  %s55, 32, %s57, [#allocation6], 16, 16, 1
    $region21: #{tpu_custom_call.1} parent=1 // pred_fallthru
      _
    // Predicated region
    $region22: #{tpu_custom_call.1} parent=1 // pred_check
      _
    $region23: #{tpu_custom_call.1} parent=1 // pred_check_branch
      %64 = sbr.rel (0) target = $region25
    $region24: #{tpu_custom_call.1} parent=1 // pred_region
      _
    $region25: #{tpu_custom_call.1} parent=1 // pred_fallthru
      _
    // Predicated region
    $region26: #{tpu_custom_call.1} parent=1 // pred_check
      _
    $region27: #{tpu_custom_call.1} parent=1 // pred_check_branch
      %66 = sbr.rel (0) target = $region29
    $region28: #{tpu_custom_call.1} parent=1 // pred_region
      _
    $region29: #{tpu_custom_call.1} parent=1 // pred_fallthru
      _
    // Predicated region
    $region30: #{tpu_custom_call.1} parent=1 // pred_check
      _
    $region31: #{tpu_custom_call.1} parent=1 // pred_check_branch
      %68 = sbr.rel (0) target = $region33
    $region32: #{tpu_custom_call.1} parent=1 // pred_region
      _
    $region33: #{tpu_custom_call.1} parent=1 // pred_fallthru
      _
    // Predicated region
    $region34: #{tpu_custom_call.1} parent=1 // pred_check
      _
    $region35: #{tpu_custom_call.1} parent=1 // pred_check_branch
      %70 = sbr.rel (0) target = $region37
    $region36: #{tpu_custom_call.1} parent=1 // pred_region
      _
    $region37: #{tpu_custom_call.1} parent=1 // pred_fallthru
      _
    // Predicated region
    $region38: #{tpu_custom_call.1} parent=1 // pred_check
      _
    $region39: #{tpu_custom_call.1} parent=1 // pred_check_branch
      %72 = sbr.rel (0) target = $region41
    $region40: #{tpu_custom_call.1} parent=1 // pred_region
      _
    $region41: #{tpu_custom_call.1} parent=1 // pred_fallthru
      _
    // Predicated region
    $region42: #{tpu_custom_call.1} parent=1 // pred_check
      _
    $region43: #{tpu_custom_call.1} parent=1 // pred_check_branch
      %74 = sbr.rel (0) target = $region45
    $region44: #{tpu_custom_call.1} parent=1 // pred_region
      _
    $region45: #{tpu_custom_call.1} parent=1 // pred_fallthru
      _
    // Predicated region
    $region46: #{tpu_custom_call.1} parent=1 // pred_check
      _
    $region47: #{tpu_custom_call.1} parent=1 // pred_check_branch
      %76 = sbr.rel (0) target = $region49
    $region48: #{tpu_custom_call.1} parent=1 // pred_region
      %78 = vsyncadd [#allocation6], 0
      %s79 = sshll.u32 %s11, 4
      %s80 = int_to_ptr.hbm [resolvable:$true] %s79
      %s81 = sshll.u32 [#allocation7], 4
      %s82 = int_to_ptr.vmem [resolvable:$true] %s81
      %87 = dma.hbm_to_vmem [thread:$0]  %s80, 32, %s82, [#allocation6], 16, 16, 1
    $region49: #{tpu_custom_call.1} parent=1 // pred_fallthru
      _
    // Predicated region
    $region50: #{tpu_custom_call.1} parent=1 // pred_check
      _
    $region51: #{tpu_custom_call.1} parent=1 // pred_check_branch
      %89 = sbr.rel (0) target = $region53
    $region52: #{tpu_custom_call.1} parent=1 // pred_region
      _
    $region53: #{tpu_custom_call.1} parent=1 // pred_fallthru
      _
    // Predicated region
    $region54: #{tpu_custom_call.1} parent=1 // pred_check
      _
    $region55: #{tpu_custom_call.1} parent=1 // pred_check_branch
      %91 = sbr.rel (0) target = $region57
    $region56: #{tpu_custom_call.1} parent=1 // pred_region
      _
    $region57: #{tpu_custom_call.1} parent=1 // pred_fallthru
      _
    // Predicated region
    $region58: #{tpu_custom_call.1} parent=1 // pred_check
      _
    $region59: #{tpu_custom_call.1} parent=1 // pred_check_branch
      %93 = sbr.rel (0) target = $region61
    $region60: #{tpu_custom_call.1} parent=1 // pred_region
      _
    $region61: #{tpu_custom_call.1} parent=1 // pred_fallthru
      _
    // Predicated region
    $region62: #{tpu_custom_call.1} parent=1 // pred_check
      _
    $region63: #{tpu_custom_call.1} parent=1 // pred_check_branch
      %95 = sbr.rel (0) target = $region65
    $region64: #{tpu_custom_call.1} parent=1 // pred_region
      %97 = vsyncadd [#allocation9], 0
      %s98 = sshll.u32 %s15, 4
      %s99 = int_to_ptr.hbm [resolvable:$true] %s98
      %s100 = sshll.u32 [#allocation8], 4
      %s101 = int_to_ptr.vmem [resolvable:$true] %s100
      %106 = dma.hbm_to_vmem [thread:$0]  %s99, 32, %s101, [#allocation9], 16, 16, 1
    $region65: #{tpu_custom_call.1} parent=1 // pred_fallthru
      _
    // Predicated region
    $region66: #{tpu_custom_call.1} parent=1 // pred_check
      _
    $region67: #{tpu_custom_call.1} parent=1 // pred_check_branch
      %108 = sbr.rel (0) target = $region69
    $region68: #{tpu_custom_call.1} parent=1 // pred_region
      _
    $region69: #{tpu_custom_call.1} parent=1 // pred_fallthru
      _
    // Predicated region
    $region70: #{tpu_custom_call.1} parent=1 // pred_check
      _
    $region71: #{tpu_custom_call.1} parent=1 // pred_check_branch
      %110 = sbr.rel (0) target = $region73
    $region72: #{tpu_custom_call.1} parent=1 // pred_region
      %112 = vsyncadd [#allocation9], 0
      %s113 = sshll.u32 %s17, 4
      %s114 = int_to_ptr.hbm [resolvable:$true] %s113
      %s115 = sshll.u32 [#allocation10], 4
      %s116 = int_to_ptr.vmem [resolvable:$true] %s115
      %121 = dma.hbm_to_vmem [thread:$0]  %s114, 32, %s116, [#allocation9], 16, 16, 1
    $region73: #{tpu_custom_call.1} parent=1 // pred_fallthru
      _
    // Predicated region
    $region74: #{tpu_custom_call.1} parent=1 // pred_check
      _
    $region75: #{tpu_custom_call.1} parent=1 // pred_check_branch
      %123 = sbr.rel (0) target = $region77
    $region76: #{tpu_custom_call.1} parent=1 // pred_region
      _
    $region77: #{tpu_custom_call.1} parent=1 // pred_fallthru
      _
    // Predicated region
    $region78: #{tpu_custom_call.1} parent=1 // pred_check
      _
    $region79: #{tpu_custom_call.1} parent=1 // pred_check_branch
      %125 = sbr.rel (0) target = $region81
    $region80: #{tpu_custom_call.1} parent=1 // pred_region
      _
    $region81: #{tpu_custom_call.1} parent=1 // pred_fallthru
      _
    // Predicated region
    $region82: #{tpu_custom_call.1} parent=1 // pred_check
      _
    $region83: #{tpu_custom_call.1} parent=1 // pred_check_branch
      %127 = sbr.rel (0) target = $region85
    $region84: #{tpu_custom_call.1} parent=1 // pred_region
      _
    $region85: #{tpu_custom_call.1} parent=1 // pred_fallthru
      _
    // Predicated region
    $region86: #{tpu_custom_call.1} parent=1 // pred_check
      _
    $region87: #{tpu_custom_call.1} parent=1 // pred_check_branch
      %129 = sbr.rel (0) target = $region89
    $region88: #{tpu_custom_call.1} parent=1 // pred_region
      _
    $region89: #{tpu_custom_call.1} parent=1 // pred_fallthru
      _
    // Predicated region
    $region90: #{tpu_custom_call.1} parent=1 // pred_check
      _
    $region91: #{tpu_custom_call.1} parent=1 // pred_check_branch
      %131 = sbr.rel (0) target = $region93
    $region92: #{tpu_custom_call.1} parent=1 // pred_region
      _
    $region93: #{tpu_custom_call.1} parent=1 // pred_fallthru
      _
    // Predicated region
    $region94: #{tpu_custom_call.1} parent=1 // pred_check
      _
    $region95: #{tpu_custom_call.1} parent=1 // pred_check_branch
      %133 = sbr.rel (0) target = $region97
    $region96: #{tpu_custom_call.1} parent=1 // pred_region
      _
    $region97: #{tpu_custom_call.1} parent=1 // pred_fallthru
      _
    // Predicated region
    $region98: #{tpu_custom_call.1} parent=1 // pred_check
      _
    $region99: #{tpu_custom_call.1} parent=1 // pred_check_branch
      %135 = sbr.rel (0) target = $region101
    $region100: #{tpu_custom_call.1} parent=1 // pred_region
      %137 = dma.done [#allocation3], 16
    $region101: #{tpu_custom_call.1} parent=1 // pred_fallthru
      _
    // Predicated region
    $region102: #{tpu_custom_call.1} parent=1 // pred_check
      _
    $region103: #{tpu_custom_call.1} parent=1 // pred_check_branch
      %139 = sbr.rel (0) target = $region105
    $region104: #{tpu_custom_call.1} parent=1 // pred_region
      %141 = dma.done [#allocation6], 32
    $region105: #{tpu_custom_call.1} parent=1 // pred_fallthru
      _
    // Predicated region
    $region106: #{tpu_custom_call.1} parent=1 // pred_check
      _
    $region107: #{tpu_custom_call.1} parent=1 // pred_check_branch
      %143 = sbr.rel (0) target = $region109
    $region108: #{tpu_custom_call.1} parent=1 // pred_region
      %145 = dma.done [#allocation6], 32
    $region109: #{tpu_custom_call.1} parent=1 // pred_fallthru
      _
    // Predicated region
    $region110: #{tpu_custom_call.1} parent=1 // pred_check
      _
    $region111: #{tpu_custom_call.1} parent=1 // pred_check_branch
      %147 = sbr.rel (0) target = $region113
    $region112: #{tpu_custom_call.1} parent=1 // pred_region
      %149 = dma.done [#allocation9], 32
    $region113: #{tpu_custom_call.1} parent=1 // pred_fallthru
      _
    // Predicated region
    $region114: #{tpu_custom_call.1} parent=1 // pred_check
      _
    $region115: #{tpu_custom_call.1} parent=1 // pred_check_branch
      %151 = sbr.rel (0) target = $region117
    $region116: #{tpu_custom_call.1} parent=1 // pred_region
      %153 = dma.done [#allocation9], 32
    $region117: #{tpu_custom_call.1} parent=1 // pred_fallthru
      _
    %v154 = vld [vmem:[%s0] sm:$0xff]
    %v155 = vld [vmem:[%s0 + $0x8] sm:$0xff]
    %v156 = vlaneseq
    %v157 = vand.u32 %v156, 127
    %158 = vset.pattern.permute.xlu0 0
    %159 = vperm.xlu0 %158, %v154
    %v160 = vpop.permute.xlu0 %159
    %161 = vset.pattern.permute.xlu0 0
    %162 = vperm.xlu0 %161, %v155
    %v163 = vpop.permute.xlu0 %162
    %vm164 = vcmp.eq.s32.totalorder %v160, %v157
    %vm165 = vcmp.eq.s32.totalorder %v163, %v157
    %v166 = vsel %vm164, 1, 0
    %v167 = vsel %vm165, 1, 0
    %v168 = vcvt.s32.f32 %v166
    %v169 = vcvt.s32.f32 %v167
    %v170 = vld [vmem:[%s2] sm:$0xff]
    %v171 = vld [vmem:[%s2 + $0x8] sm:$0xff]
    %v172 = vld [vmem:[%s2 + $0x10] sm:$0xff]
    %v173 = vld [vmem:[%s2 + $0x18] sm:$0xff]
    %v174 = vld [vmem:[%s2 + $0x20] sm:$0xff]
    %v175 = vld [vmem:[%s2 + $0x28] sm:$0xff]
    %v176 = vld [vmem:[%s2 + $0x30] sm:$0xff]
    %v177 = vld [vmem:[%s2 + $0x38] sm:$0xff]
    %v178 = vld [vmem:[%s3] sm:$0xff]
    %v179 = vld [vmem:[%s3 + $0x8] sm:$0xff]
    %vm180 = vcmask 523264
    %v182 = vsel %vm180, %v168, 0
    %v185 = vsel %vm180, %v169, 0
    %187 = vmatpush.msra.mxu0 0.0
    %188 = vmatpush.msra.mxu0 0.0
    %189 = vmatpush.msra.mxu0 0.0
    %190 = vmatpush.msra.mxu0 0.0
    %191 = vmatpush.msra.mxu0 0.0
    %192 = vmatpush.msra.mxu0 0.0
    %193 = vmatpush.msra.mxu0 0.0
    %194 = vmatpush.msra.mxu0 0.0
    %195 = vmatpush.msra.mxu0 %v177
    %196 = vmatpush.msra.mxu0 %v176
    %197 = vmatpush.msra.mxu0 %v175
    %198 = vmatpush.msra.mxu0 %v174
    %199 = vmatpush.msra.mxu0 %v173
    %200 = vmatpush.msra.mxu0 %v172
    %201 = vmatpush.msra.mxu0 %v171
    %202 = vmatpush.msra.mxu0 %v170
    %203 = vmatmul.f32.gmra.mxu0 %v182
    %v204 = vpop.f32.mrf.mxu0
    %v205 = vadd.f32 %v178, %v204
    %206 = vmatmul.f32.gmra.mxu0 %v185
    %v207 = vpop.f32.mrf.mxu0
    %v208 = vadd.f32 %v179, %v207
    %209 = vdwg.mxu0
    %v210 = vld [vmem:[#allocation5] sm:$0x1]
    %s211 = scalar_lea.vmem [#allocation5], 1
    %v212 = vld [vmem:[%s211] sm:$0x1]
    %vm213 = vcmask 261120
    %v214 = vsel %vm213, %v205, 0.0
    %215 = vadd.xlane.f32.xlu0 %v214
    %v216 = vpop.xlane.xlu0 %215
    %v217 = vsel %vm213, %v208, 0.0
    %218 = vadd.xlane.f32.xlu0 %v217
    %v219 = vpop.xlane.xlu0 %218
    %v220 = vrcp.pop 32.0
    %v221 = vmul.f32 32.0, %v220
    %v222 = vsub.f32 1.0, %v221
    %v223 = vmul.f32 %v220, %v222
    %v224 = vadd.f32 %v220, %v223
    %vm225 = vweird.f32 %v220
    %v226 = vsel %vm225, %v220, %v224
    %v227 = vmul.f32 %v216, %v226
    %v228 = vmul.f32 %v219, %v226
    %v229 = vsub.f32 %v205, %v227
    %v230 = vsub.f32 %v208, %v228
    %v231 = vmul.f32 %v229, %v229
    %v232 = vmul.f32 %v230, %v230
    %v233 = vsel %vm213, %v231, 0.0
    %234 = vadd.xlane.f32.xlu0 %v233
    %v235 = vpop.xlane.xlu0 %234
    %v236 = vsel %vm213, %v232, 0.0
    %237 = vadd.xlane.f32.xlu0 %v236
    %v238 = vpop.xlane.xlu0 %237
    %v239 = vmul.f32 %v235, %v226
    %v240 = vmul.f32 %v238, %v226
    %v241 = vadd.f32 %v239, 1e-12
    %v242 = vadd.f32 %v240, 1e-12
    %v243 = vrsqrt.pop %v241
    %v244 = vmul.f32 %v243, %v241
    %v245 = vmul.f32 %v244, %v243
    %v246 = vmul.f32 0.5, %v245
    %v247 = vsub.f32 1.5, %v246
    %v248 = vmul.f32 %v243, %v247
    %vm249 = vweird.f32 %v241
    %vm250 = vweird.f32 %v243
    %vm251 = vmor %vm249, %vm250
    %v252 = vsel %vm251, %v243, %v248
    %v253 = vrsqrt.pop %v242
    %v254 = vmul.f32 %v253, %v242
    %v255 = vmul.f32 %v254, %v253
    %v256 = vmul.f32 0.5, %v255
    %v257 = vsub.f32 1.5, %v256
    %v258 = vmul.f32 %v253, %v257
    %vm259 = vweird.f32 %v242
    %vm260 = vweird.f32 %v253
    %vm261 = vmor %vm259, %vm260
    %v262 = vsel %vm261, %v253, %v258
    %v263 = vmul.f32 %v229, %v252
    %v264 = vmul.f32 %v230, %v262
    %v266 = vperm.slane %v210, 0
    %v268 = vmul.f32 %v263, %v266
    %v269 = vmul.f32 %v264, %v266
    %v271 = vperm.slane %v212, 0
    %v273 = vadd.f32 %v268, %v271
    %v274 = vadd.f32 %v269, %v271
    %v275 = vld [vmem:[%s7] sm:$0xff]
    %v276 = vld [vmem:[%s7 + $0x8] sm:$0xff]
    %v277 = vld [vmem:[#allocation2] sm:$0x1]
    %v278 = vsub.f32 %v277, 1.0
    %v280 = vperm.slane %v278, 0
    %v282 = vmul.f32 %v275, %v280
    %v283 = vmul.f32 %v276, %v280
    %v284 = vld [vmem:[%s8] sm:$0xff]
    %v285 = vld [vmem:[%s8 + $0x8] sm:$0xff]
    %v286 = vadd.f32 %v282, %v284
    %v287 = vadd.f32 %v283, %v285
    %v288 = vld [vmem:[%s5] sm:$0xff]
    %v289 = vld [vmem:[%s5 + $0x8] sm:$0xff]
    %v290 = vld [vmem:[%s5 + $0x10] sm:$0xff]
    %v291 = vld [vmem:[%s5 + $0x18] sm:$0xff]
    %v292 = vld [vmem:[%s5 + $0x20] sm:$0xff]
    %v293 = vld [vmem:[%s5 + $0x28] sm:$0xff]
    %v294 = vld [vmem:[%s5 + $0x30] sm:$0xff]
    %v295 = vld [vmem:[%s5 + $0x38] sm:$0xff]
    %v296 = vld [vmem:[%s6] sm:$0xff]
    %v297 = vld [vmem:[%s6 + $0x8] sm:$0xff]
    %v298 = vld [vmem:[%s6 + $0x10] sm:$0xff]
    %v299 = vld [vmem:[%s6 + $0x18] sm:$0xff]
    %v300 = vld [vmem:[%s6 + $0x20] sm:$0xff]
    %v301 = vld [vmem:[%s6 + $0x28] sm:$0xff]
    %v302 = vld [vmem:[%s6 + $0x30] sm:$0xff]
    %v303 = vld [vmem:[%s6 + $0x38] sm:$0xff]
    %v304 = vld [vmem:[%s10] sm:$0xff]
    %v305 = vld [vmem:[%s10 + $0x8] sm:$0xff]
    %v306 = vld [vmem:[%s10 + $0x10] sm:$0xff]
    %v307 = vld [vmem:[%s10 + $0x18] sm:$0xff]
    %v308 = vld [vmem:[#allocation7] sm:$0x1]
    %v310 = vperm.slane %v308, 0
    %v313 = vsel %vm213, %v273, 0
    %v316 = vsel %vm213, %v274, 0
    %318 = vmatpush.msra.mxu0 0.0
    %319 = vmatpush.msra.mxu0 0.0
    %320 = vmatpush.msra.mxu0 0.0
    %321 = vmatpush.msra.mxu0 0.0
    %322 = vmatpush.msra.mxu0 0.0
    %323 = vmatpush.msra.mxu0 0.0
    %324 = vmatpush.msra.mxu0 0.0
    %325 = vmatpush.msra.mxu0 0.0
    %326 = vmatpush.msra.mxu0 0.0
    %327 = vmatpush.msra.mxu0 0.0
    %328 = vmatpush.msra.mxu0 0.0
    %329 = vmatpush.msra.mxu0 0.0
    %330 = vmatpush.msra.mxu0 %v307
    %331 = vmatpush.msra.mxu0 %v306
    %332 = vmatpush.msra.mxu0 %v305
    %333 = vmatpush.msra.mxu0 %v304
    %334 = vmatmul.f32.gmra.mxu0 %v313
    %v335 = vpop.f32.mrf.mxu0
    %v336 = vadd.f32 %v310, %v335
    %337 = vmatmul.f32.gmra.mxu0 %v316
    %v338 = vpop.f32.mrf.mxu0
    %v339 = vadd.f32 %v310, %v338
    %340 = vdwg.mxu0
    %v341 = vmul.f32 %v336, 0.35355338
    %v342 = vmul.f32 %v339, 0.35355338
    %v343 = vld [vmem:[%s12] sm:$0xff]
    %v344 = vld [vmem:[%s12 + $0x8] sm:$0xff]
    %v345 = vld [vmem:[%s12 + $0x10] sm:$0xff]
    %v346 = vld [vmem:[%s12 + $0x18] sm:$0xff]
    %v347 = vld [vmem:[%s13] sm:$0x1]
    %v349 = vperm.slane %v347, 0
    %351 = vmatpush.msra.mxu0 0.0
    %352 = vmatpush.msra.mxu0 0.0
    %353 = vmatpush.msra.mxu0 0.0
    %354 = vmatpush.msra.mxu0 0.0
    %355 = vmatpush.msra.mxu0 0.0
    %356 = vmatpush.msra.mxu0 0.0
    %357 = vmatpush.msra.mxu0 0.0
    %358 = vmatpush.msra.mxu0 0.0
    %359 = vmatpush.msra.mxu0 0.0
    %360 = vmatpush.msra.mxu0 0.0
    %361 = vmatpush.msra.mxu0 0.0
    %362 = vmatpush.msra.mxu0 0.0
    %363 = vmatpush.msra.mxu0 %v346
    %364 = vmatpush.msra.mxu0 %v345
    %365 = vmatpush.msra.mxu0 %v344
    %366 = vmatpush.msra.mxu0 %v343
    %367 = vmatmul.f32.gmra.mxu0 %v313
    %v368 = vpop.f32.mrf.mxu0
    %v369 = vadd.f32 %v349, %v368
    %370 = vmatmul.f32.gmra.mxu0 %v316
    %v371 = vpop.f32.mrf.mxu0
    %v372 = vadd.f32 %v349, %v371
    %373 = vdwg.mxu0
    %v374 = vld [vmem:[%s14] sm:$0xff]
    %v375 = vld [vmem:[%s14 + $0x8] sm:$0xff]
    %v376 = vld [vmem:[%s14 + $0x10] sm:$0xff]
    %v377 = vld [vmem:[%s14 + $0x18] sm:$0xff]
    %v378 = vld [vmem:[#allocation8] sm:$0x1]
    %v380 = vperm.slane %v378, 0
    %382 = vmatpush.msra.mxu0 0.0
    %383 = vmatpush.msra.mxu0 0.0
    %384 = vmatpush.msra.mxu0 0.0
    %385 = vmatpush.msra.mxu0 0.0
    %386 = vmatpush.msra.mxu0 0.0
    %387 = vmatpush.msra.mxu0 0.0
    %388 = vmatpush.msra.mxu0 0.0
    %389 = vmatpush.msra.mxu0 0.0
    %390 = vmatpush.msra.mxu0 0.0
    %391 = vmatpush.msra.mxu0 0.0
    %392 = vmatpush.msra.mxu0 0.0
    %393 = vmatpush.msra.mxu0 0.0
    %394 = vmatpush.msra.mxu0 %v377
    %395 = vmatpush.msra.mxu0 %v376
    %396 = vmatpush.msra.mxu0 %v375
    %397 = vmatpush.msra.mxu0 %v374
    %398 = vmatmul.f32.gmra.mxu0 %v313
    %v399 = vpop.f32.mrf.mxu0
    %v400 = vadd.f32 %v380, %v399
    %401 = vmatmul.f32.gmra.mxu0 %v316
    %v402 = vpop.f32.mrf.mxu0
    %v403 = vadd.f32 %v380, %v402
    %404 = vdwg.mxu0
    %vm405 = vcmask 130048
    %v407 = vsel %vm405, %v288, 0
    %v410 = vsel %vm405, %v289, 0
    %v413 = vsel %vm405, %v290, 0
    %v416 = vsel %vm405, %v291, 0
    %v419 = vsel %vm405, %v292, 0
    %v422 = vsel %vm405, %v293, 0
    %v425 = vsel %vm405, %v294, 0
    %v428 = vsel %vm405, %v295, 0
    %430 = vmatpush.msra.mxu0 0.0
    %431 = vmatpush.msra.mxu0 0.0
    %432 = vmatpush.msra.mxu0 0.0
    %433 = vmatpush.msra.mxu0 0.0
    %434 = vmatpush.msra.mxu0 0.0
    %435 = vmatpush.msra.mxu0 0.0
    %436 = vmatpush.msra.mxu0 0.0
    %437 = vmatpush.msra.mxu0 0.0
    %438 = vmatpush.msra.mxu0 0.0
    %439 = vmatpush.msra.mxu0 0.0
    %440 = vmatpush.msra.mxu0 0.0
    %441 = vmatpush.msra.mxu0 0.0
    %442 = vmatpush.msra.mxu0 0.0
    %443 = vmatpush.msra.mxu0 0.0
    %444 = vmatpush.msra.mxu0 %v372
    %445 = vmatpush.msra.mxu0 %v369
    %446 = vmatmul.f32.gmra.mxu0 %v407
    %v447 = vpop.f32.mrf.mxu0
    %v448 = vadd.f32 0.0, %v447
    %449 = vmatmul.f32.gmra.mxu0 %v410
    %v450 = vpop.f32.mrf.mxu0
    %v451 = vadd.f32 0.0, %v450
    %452 = vmatmul.f32.gmra.mxu0 %v413
    %v453 = vpop.f32.mrf.mxu0
    %v454 = vadd.f32 0.0, %v453
    %455 = vmatmul.f32.gmra.mxu0 %v416
    %v456 = vpop.f32.mrf.mxu0
    %v457 = vadd.f32 0.0, %v456
    %458 = vmatmul.f32.gmra.mxu0 %v419
    %v459 = vpop.f32.mrf.mxu0
    %v460 = vadd.f32 0.0, %v459
    %461 = vmatmul.f32.gmra.mxu0 %v422
    %v462 = vpop.f32.mrf.mxu0
    %v463 = vadd.f32 0.0, %v462
    %464 = vmatmul.f32.gmra.mxu0 %v425
    %v465 = vpop.f32.mrf.mxu0
    %v466 = vadd.f32 0.0, %v465
    %467 = vmatmul.f32.gmra.mxu0 %v428
    %v468 = vpop.f32.mrf.mxu0
    %v469 = vadd.f32 0.0, %v468
    %470 = vdwg.mxu0
    %v471 = vmul.f32 %v448, %v296
    %v472 = vmul.f32 %v451, %v297
    %v473 = vmul.f32 %v454, %v298
    %v474 = vmul.f32 %v457, %v299
    %v475 = vmul.f32 %v460, %v300
    %v476 = vmul.f32 %v463, %v301
    %v477 = vmul.f32 %v466, %v302
    %v478 = vmul.f32 %v469, %v303
    %479 = vmatpush.msra.mxu0 0.0
    %480 = vmatpush.msra.mxu0 0.0
    %481 = vmatpush.msra.mxu0 0.0
    %482 = vmatpush.msra.mxu0 0.0
    %483 = vmatpush.msra.mxu0 0.0
    %484 = vmatpush.msra.mxu0 0.0
    %485 = vmatpush.msra.mxu0 0.0
    %486 = vmatpush.msra.mxu0 0.0
    %487 = vmatpush.msra.mxu0 0.0
    %488 = vmatpush.msra.mxu0 0.0
    %489 = vmatpush.msra.mxu0 0.0
    %490 = vmatpush.msra.mxu0 0.0
    %491 = vmatpush.msra.mxu0 0.0
    %492 = vmatpush.msra.mxu0 0.0
    %493 = vmatpush.msra.mxu0 %v403
    %494 = vmatpush.msra.mxu0 %v400
    %495 = vmatmul.f32.gmra.mxu0 %v407
    %v496 = vpop.f32.mrf.mxu0
    %v497 = vadd.f32 0.0, %v496
    %498 = vmatmul.f32.gmra.mxu0 %v410
    %v499 = vpop.f32.mrf.mxu0
    %v500 = vadd.f32 0.0, %v499
    %501 = vmatmul.f32.gmra.mxu0 %v413
    %v502 = vpop.f32.mrf.mxu0
    %v503 = vadd.f32 0.0, %v502
    %504 = vmatmul.f32.gmra.mxu0 %v416
    %v505 = vpop.f32.mrf.mxu0
    %v506 = vadd.f32 0.0, %v505
    %507 = vmatmul.f32.gmra.mxu0 %v419
    %v508 = vpop.f32.mrf.mxu0
    %v509 = vadd.f32 0.0, %v508
    %510 = vmatmul.f32.gmra.mxu0 %v422
    %v511 = vpop.f32.mrf.mxu0
    %v512 = vadd.f32 0.0, %v511
    %513 = vmatmul.f32.gmra.mxu0 %v425
    %v514 = vpop.f32.mrf.mxu0
    %v515 = vadd.f32 0.0, %v514
    %516 = vmatmul.f32.gmra.mxu0 %v428
    %v517 = vpop.f32.mrf.mxu0
    %v518 = vadd.f32 0.0, %v517
    %519 = vdwg.mxu0
    %v520 = vmul.f32 %v497, %v296
    %v521 = vmul.f32 %v500, %v297
    %v522 = vmul.f32 %v503, %v298
    %v523 = vmul.f32 %v506, %v299
    %v524 = vmul.f32 %v509, %v300
    %v525 = vmul.f32 %v512, %v301
    %v526 = vmul.f32 %v515, %v302
    %v527 = vmul.f32 %v518, %v303
    %v529 = vsel %vm213, %v341, 0
    %v532 = vsel %vm213, %v342, 0
    %v535 = vsel %vm213, %v471, 0
    %v538 = vsel %vm213, %v472, 0
    %v541 = vsel %vm213, %v473, 0
    %v544 = vsel %vm213, %v474, 0
    %v547 = vsel %vm213, %v475, 0
    %v550 = vsel %vm213, %v476, 0
    %v553 = vsel %vm213, %v477, 0
    %v556 = vsel %vm213, %v478, 0
    %558 = vmatpush.xpose.msra.mxu0 0.0
    %559 = vmatpush.xpose.msra.mxu0 0.0
    %560 = vmatpush.xpose.msra.mxu0 0.0
    %561 = vmatpush.xpose.msra.mxu0 0.0
    %562 = vmatpush.xpose.msra.mxu0 0.0
    %563 = vmatpush.xpose.msra.mxu0 0.0
    %564 = vmatpush.xpose.msra.mxu0 0.0
    %565 = vmatpush.xpose.msra.mxu0 0.0
    %566 = vmatpush.xpose.msra.mxu0 %v556
    %567 = vmatpush.xpose.msra.mxu0 %v553
    %568 = vmatpush.xpose.msra.mxu0 %v550
    %569 = vmatpush.xpose.msra.mxu0 %v547
    %570 = vmatpush.xpose.msra.mxu0 %v544
    %571 = vmatpush.xpose.msra.mxu0 %v541
    %572 = vmatpush.xpose.msra.mxu0 %v538
    %573 = vmatpush.xpose.msra.mxu0 %v535
    %574 = vmatmul.f32.gmra.mxu0 %v529
    %v575 = vpop.f32.mrf.mxu0
    %v576 = vadd.f32 %v286, %v575
    %577 = vmatmul.f32.gmra.mxu0 %v532
    %v578 = vpop.f32.mrf.mxu0
    %v579 = vadd.f32 %v287, %v578
    %580 = vdwg.mxu0
    %v581 = vsel %vm180, %v576, -inf
    %582 = vmax.xlane.f32.xlu0 %v581
    %v583 = vpop.xlane.xlu0 %582
    %v584 = vsel %vm180, %v579, -inf
    %585 = vmax.xlane.f32.xlu0 %v584
    %v586 = vpop.xlane.xlu0 %585
    %v587 = vsub.f32 %v576, %v583
    %v588 = vsub.f32 %v579, %v586
    %v589 = vmul.f32 %v587, 1.442695
    %v590 = vpow.pop %v589
    %v591 = vmul.f32 %v588, 1.442695
    %v592 = vpow.pop %v591
    %v594 = vsel %vm180, %v590, 0
    %v597 = vsel %vm180, %v592, 0
    %599 = vmatpush.msra.mxu0 0.0
    %600 = vmatpush.msra.mxu0 0.0
    %601 = vmatpush.msra.mxu0 0.0
    %602 = vmatpush.msra.mxu0 0.0
    %603 = vmatpush.msra.mxu0 0.0
    %604 = vmatpush.msra.mxu0 0.0
    %605 = vmatpush.msra.mxu0 0.0
    %606 = vmatpush.msra.mxu0 0.0
    %607 = vmatpush.msra.mxu0 %v527
    %608 = vmatpush.msra.mxu0 %v526
    %609 = vmatpush.msra.mxu0 %v525
    %610 = vmatpush.msra.mxu0 %v524
    %611 = vmatpush.msra.mxu0 %v523
    %612 = vmatpush.msra.mxu0 %v522
    %613 = vmatpush.msra.mxu0 %v521
    %614 = vmatpush.msra.mxu0 %v520
    %615 = vmatmul.f32.gmra.mxu0 %v594
    %v616 = vpop.f32.mrf.mxu0
    %v617 = vadd.f32 0.0, %v616
    %618 = vmatmul.f32.gmra.mxu0 %v597
    %v619 = vpop.f32.mrf.mxu0
    %v620 = vadd.f32 0.0, %v619
    %621 = vdwg.mxu0
    %622 = vmatpush.msra.mxu0 0.0
    %623 = vmatpush.msra.mxu0 0.0
    %624 = vmatpush.msra.mxu0 0.0
    %625 = vmatpush.msra.mxu0 0.0
    %626 = vmatpush.msra.mxu0 0.0
    %627 = vmatpush.msra.mxu0 0.0
    %628 = vmatpush.msra.mxu0 0.0
    %629 = vmatpush.msra.mxu0 0.0
    %630 = vmatpush.msra.mxu0 %v303
    %631 = vmatpush.msra.mxu0 %v302
    %632 = vmatpush.msra.mxu0 %v301
    %633 = vmatpush.msra.mxu0 %v300
    %634 = vmatpush.msra.mxu0 %v299
    %635 = vmatpush.msra.mxu0 %v298
    %636 = vmatpush.msra.mxu0 %v297
    %637 = vmatpush.msra.mxu0 %v296
    %638 = vmatmul.f32.gmra.mxu0 %v594
    %v639 = vpop.f32.mrf.mxu0
    %v640 = vadd.f32 0.0, %v639
    %641 = vmatmul.f32.gmra.mxu0 %v597
    %v642 = vpop.f32.mrf.mxu0
    %v643 = vadd.f32 0.0, %v642
    %644 = vdwg.mxu0
    %v645 = vrcp.pop %v640
    %v646 = vrcp.pop %v643
    %v647 = vmul.f32 %v617, %v645
    %v648 = vmul.f32 %v620, %v646
    %v649 = vld [vmem:[%s16] sm:$0xff]
    %v650 = vld [vmem:[%s16 + $0x8] sm:$0xff]
    %v651 = vld [vmem:[%s16 + $0x10] sm:$0xff]
    %v652 = vld [vmem:[%s16 + $0x18] sm:$0xff]
    %v653 = vld [vmem:[#allocation10] sm:$0x1]
    %v655 = vperm.slane %v653, 0
    %v658 = vsel %vm213, %v647, 0
    %v661 = vsel %vm213, %v648, 0
    %663 = vmatpush.msra.mxu0 0.0
    %664 = vmatpush.msra.mxu0 0.0
    %665 = vmatpush.msra.mxu0 0.0
    %666 = vmatpush.msra.mxu0 0.0
    %667 = vmatpush.msra.mxu0 0.0
    %668 = vmatpush.msra.mxu0 0.0
    %669 = vmatpush.msra.mxu0 0.0
    %670 = vmatpush.msra.mxu0 0.0
    %671 = vmatpush.msra.mxu0 0.0
    %672 = vmatpush.msra.mxu0 0.0
    %673 = vmatpush.msra.mxu0 0.0
    %674 = vmatpush.msra.mxu0 0.0
    %675 = vmatpush.msra.mxu0 %v652
    %676 = vmatpush.msra.mxu0 %v651
    %677 = vmatpush.msra.mxu0 %v650
    %678 = vmatpush.msra.mxu0 %v649
    %679 = vmatmul.f32.gmra.mxu0 %v658
    %v680 = vpop.f32.mrf.mxu0
    %v681 = vadd.f32 %v655, %v680
    %682 = vmatmul.f32.gmra.mxu0 %v661
    %v683 = vpop.f32.mrf.mxu0
    %v684 = vadd.f32 %v655, %v683
    %685 = vdwg.mxu0
    %v686 = vadd.f32 %v273, %v681
    %v687 = vadd.f32 %v274, %v684
    %v688 = vld [vmem:[%s18] sm:$0x1]
    %s689 = scalar_lea.vmem %s18, 1
    %v690 = vld [vmem:[%s689] sm:$0x1]
    %v691 = vsel %vm213, %v686, 0.0
    %692 = vadd.xlane.f32.xlu0 %v691
    %v693 = vpop.xlane.xlu0 %692
    %v694 = vsel %vm213, %v687, 0.0
    %695 = vadd.xlane.f32.xlu0 %v694
    %v696 = vpop.xlane.xlu0 %695
    %v697 = vmul.f32 %v693, %v226
    %v698 = vmul.f32 %v696, %v226
    %v699 = vsub.f32 %v686, %v697
    %v700 = vsub.f32 %v687, %v698
    %v701 = vmul.f32 %v699, %v699
    %v702 = vmul.f32 %v700, %v700
    %v703 = vsel %vm213, %v701, 0.0
    %704 = vadd.xlane.f32.xlu0 %v703
    %v705 = vpop.xlane.xlu0 %704
    %v706 = vsel %vm213, %v702, 0.0
    %707 = vadd.xlane.f32.xlu0 %v706
    %v708 = vpop.xlane.xlu0 %707
    %v709 = vmul.f32 %v705, %v226
    %v710 = vmul.f32 %v708, %v226
    %v711 = vadd.f32 %v709, 1e-12
    %v712 = vadd.f32 %v710, 1e-12
    %v713 = vrsqrt.pop %v711
    %v714 = vmul.f32 %v713, %v711
    %v715 = vmul.f32 %v714, %v713
    %v716 = vmul.f32 0.5, %v715
    %v717 = vsub.f32 1.5, %v716
    %v718 = vmul.f32 %v713, %v717
    %vm719 = vweird.f32 %v711
    %vm720 = vweird.f32 %v713
    %vm721 = vmor %vm719, %vm720
    %v722 = vsel %vm721, %v713, %v718
    %v723 = vrsqrt.pop %v712
    %v724 = vmul.f32 %v723, %v712
    %v725 = vmul.f32 %v724, %v723
    %v726 = vmul.f32 0.5, %v725
    %v727 = vsub.f32 1.5, %v726
    %v728 = vmul.f32 %v723, %v727
    %vm729 = vweird.f32 %v712
    %vm730 = vweird.f32 %v723
    %vm731 = vmor %vm729, %vm730
    %v732 = vsel %vm731, %v723, %v728
    %v733 = vmul.f32 %v699, %v722
    %v734 = vmul.f32 %v700, %v732
    %v736 = vperm.slane %v688, 0
    %v738 = vmul.f32 %v733, %v736
    %v739 = vmul.f32 %v734, %v736
    %v741 = vperm.slane %v690, 0
    %v743 = vadd.f32 %v738, %v741
    %v744 = vadd.f32 %v739, %v741
    %v745 = vld [vmem:[%s19] sm:$0xff]
    %v746 = vld [vmem:[%s19 + $0x8] sm:$0xff]
    %v747 = vld [vmem:[%s19 + $0x10] sm:$0xff]
    %v748 = vld [vmem:[%s19 + $0x18] sm:$0xff]
    %v749 = vld [vmem:[%s20] sm:$0x1]
    %v751 = vperm.slane %v749, 0
    %v754 = vsel %vm213, %v743, 0
    %v757 = vsel %vm213, %v744, 0
    %759 = vmatpush.msra.mxu0 0.0
    %760 = vmatpush.msra.mxu0 0.0
    %761 = vmatpush.msra.mxu0 0.0
    %762 = vmatpush.msra.mxu0 0.0
    %763 = vmatpush.msra.mxu0 0.0
    %764 = vmatpush.msra.mxu0 0.0
    %765 = vmatpush.msra.mxu0 0.0
    %766 = vmatpush.msra.mxu0 0.0
    %767 = vmatpush.msra.mxu0 0.0
    %768 = vmatpush.msra.mxu0 0.0
    %769 = vmatpush.msra.mxu0 0.0
    %770 = vmatpush.msra.mxu0 0.0
    %771 = vmatpush.msra.mxu0 %v748
    %772 = vmatpush.msra.mxu0 %v747
    %773 = vmatpush.msra.mxu0 %v746
    %774 = vmatpush.msra.mxu0 %v745
    %775 = vmatmul.f32.gmra.mxu0 %v754
    %v776 = vpop.f32.mrf.mxu0
    %v777 = vadd.f32 %v751, %v776
    %778 = vmatmul.f32.gmra.mxu0 %v757
    %v779 = vpop.f32.mrf.mxu0
    %v780 = vadd.f32 %v751, %v779
    %781 = vdwg.mxu0
    %v782 = vmul.f32 %v777, 0.5
    %v783 = vmul.f32 %v780, 0.5
    %v784 = vmul.f32 %v777, 0.044715
    %v785 = vmul.f32 %v780, 0.044715
    %v786 = vmul.f32 %v784, %v777
    %v787 = vmul.f32 %v785, %v780
    %v788 = vmul.f32 %v786, %v777
    %v789 = vmul.f32 %v787, %v780
    %v790 = vadd.f32 %v777, %v788
    %v791 = vadd.f32 %v780, %v789
    %v792 = vmul.f32 %v790, 0.7978846
    %v793 = vmul.f32 %v791, 0.7978846
    %v794 = vtanh.pop %v792
    %v795 = vtanh.pop %v793
    %v796 = vadd.f32 %v794, 1.0
    %v797 = vadd.f32 %v795, 1.0
    %v798 = vmul.f32 %v782, %v796
    %v799 = vmul.f32 %v783, %v797
    %v800 = vld [vmem:[%s21] sm:$0xff]
    %v801 = vld [vmem:[%s21 + $0x8] sm:$0xff]
    %v802 = vld [vmem:[%s21 + $0x10] sm:$0xff]
    %v803 = vld [vmem:[%s21 + $0x18] sm:$0xff]
    %v804 = vld [vmem:[%s21 + $0x20] sm:$0xff]
    %v805 = vld [vmem:[%s21 + $0x28] sm:$0xff]
    %v806 = vld [vmem:[%s21 + $0x30] sm:$0xff]
    %v807 = vld [vmem:[%s21 + $0x38] sm:$0xff]
    %v808 = vld [vmem:[%s22] sm:$0x1]
    %v810 = vperm.slane %v808, 0
    %v813 = vsel %vm180, %v798, 0
    %v816 = vsel %vm180, %v799, 0
    %818 = vmatpush.msra.mxu0 0.0
    %819 = vmatpush.msra.mxu0 0.0
    %820 = vmatpush.msra.mxu0 0.0
    %821 = vmatpush.msra.mxu0 0.0
    %822 = vmatpush.msra.mxu0 0.0
    %823 = vmatpush.msra.mxu0 0.0
    %824 = vmatpush.msra.mxu0 0.0
    %825 = vmatpush.msra.mxu0 0.0
    %826 = vmatpush.msra.mxu0 %v807
    %827 = vmatpush.msra.mxu0 %v806
    %828 = vmatpush.msra.mxu0 %v805
    %829 = vmatpush.msra.mxu0 %v804
    %830 = vmatpush.msra.mxu0 %v803
    %831 = vmatpush.msra.mxu0 %v802
    %832 = vmatpush.msra.mxu0 %v801
    %833 = vmatpush.msra.mxu0 %v800
    %834 = vmatmul.f32.gmra.mxu0 %v813
    %v835 = vpop.f32.mrf.mxu0
    %v836 = vadd.f32 %v810, %v835
    %837 = vmatmul.f32.gmra.mxu0 %v816
    %v838 = vpop.f32.mrf.mxu0
    %v839 = vadd.f32 %v810, %v838
    %840 = vdwg.mxu0
    %v841 = vadd.f32 %v743, %v836
    %v842 = vadd.f32 %v744, %v839
    %v843 = vld [vmem:[%s23] sm:$0x1]
    %s844 = scalar_lea.vmem %s23, 1
    %v845 = vld [vmem:[%s844] sm:$0x1]
    %v846 = vsel %vm213, %v841, 0.0
    %847 = vadd.xlane.f32.xlu0 %v846
    %v848 = vpop.xlane.xlu0 %847
    %v849 = vsel %vm213, %v842, 0.0
    %850 = vadd.xlane.f32.xlu0 %v849
    %v851 = vpop.xlane.xlu0 %850
    %v852 = vmul.f32 %v848, %v226
    %v853 = vmul.f32 %v851, %v226
    %v854 = vsub.f32 %v841, %v852
    %v855 = vsub.f32 %v842, %v853
    %v856 = vmul.f32 %v854, %v854
    %v857 = vmul.f32 %v855, %v855
    %v858 = vsel %vm213, %v856, 0.0
    %859 = vadd.xlane.f32.xlu0 %v858
    %v860 = vpop.xlane.xlu0 %859
    %v861 = vsel %vm213, %v857, 0.0
    %862 = vadd.xlane.f32.xlu0 %v861
    %v863 = vpop.xlane.xlu0 %862
    %v864 = vmul.f32 %v860, %v226
    %v865 = vmul.f32 %v863, %v226
    %v866 = vadd.f32 %v864, 1e-12
    %v867 = vadd.f32 %v865, 1e-12
    %v868 = vrsqrt.pop %v866
    %v869 = vmul.f32 %v868, %v866
    %v870 = vmul.f32 %v869, %v868
    %v871 = vmul.f32 0.5, %v870
    %v872 = vsub.f32 1.5, %v871
    %v873 = vmul.f32 %v868, %v872
    %vm874 = vweird.f32 %v866
    %vm875 = vweird.f32 %v868
    %vm876 = vmor %vm874, %vm875
    %v877 = vsel %vm876, %v868, %v873
    %v878 = vrsqrt.pop %v867
    %v879 = vmul.f32 %v878, %v867
    %v880 = vmul.f32 %v879, %v878
    %v881 = vmul.f32 0.5, %v880
    %v882 = vsub.f32 1.5, %v881
    %v883 = vmul.f32 %v878, %v882
    %vm884 = vweird.f32 %v867
    %vm885 = vweird.f32 %v878
    %vm886 = vmor %vm884, %vm885
    %v887 = vsel %vm886, %v878, %v883
    %v888 = vmul.f32 %v854, %v877
    %v889 = vmul.f32 %v855, %v887
    %v891 = vperm.slane %v843, 0
    %v893 = vmul.f32 %v888, %v891
    %v894 = vmul.f32 %v889, %v891
    %v896 = vperm.slane %v845, 0
    %v898 = vadd.f32 %v893, %v896
    %v899 = vadd.f32 %v894, %v896
    %s900 = scalar_lea.vmem %s10, 32
    %v901 = vld [vmem:[%s900] sm:$0xff]
    %v902 = vld [vmem:[%s900 + $0x8] sm:$0xff]
    %v903 = vld [vmem:[%s900 + $0x10] sm:$0xff]
    %v904 = vld [vmem:[%s900 + $0x18] sm:$0xff]
    %s905 = scalar_lea.vmem [#allocation7], 1
    %v906 = vld [vmem:[%s905] sm:$0x1]
    %v908 = vperm.slane %v906, 0
    %v911 = vsel %vm213, %v898, 0
    %v914 = vsel %vm213, %v899, 0
    %916 = vmatpush.msra.mxu0 0.0
    %917 = vmatpush.msra.mxu0 0.0
    %918 = vmatpush.msra.mxu0 0.0
    %919 = vmatpush.msra.mxu0 0.0
    %920 = vmatpush.msra.mxu0 0.0
    %921 = vmatpush.msra.mxu0 0.0
    %922 = vmatpush.msra.mxu0 0.0
    %923 = vmatpush.msra.mxu0 0.0
    %924 = vmatpush.msra.mxu0 0.0
    %925 = vmatpush.msra.mxu0 0.0
    %926 = vmatpush.msra.mxu0 0.0
    %927 = vmatpush.msra.mxu0 0.0
    %928 = vmatpush.msra.mxu0 %v904
    %929 = vmatpush.msra.mxu0 %v903
    %930 = vmatpush.msra.mxu0 %v902
    %931 = vmatpush.msra.mxu0 %v901
    %932 = vmatmul.f32.gmra.mxu0 %v911
    %v933 = vpop.f32.mrf.mxu0
    %v934 = vadd.f32 %v908, %v933
    %935 = vmatmul.f32.gmra.mxu0 %v914
    %v936 = vpop.f32.mrf.mxu0
    %v937 = vadd.f32 %v908, %v936
    %938 = vdwg.mxu0
    %v939 = vmul.f32 %v934, 0.35355338
    %v940 = vmul.f32 %v937, 0.35355338
    %s941 = scalar_lea.vmem %s12, 32
    %v942 = vld [vmem:[%s941] sm:$0xff]
    %v943 = vld [vmem:[%s941 + $0x8] sm:$0xff]
    %v944 = vld [vmem:[%s941 + $0x10] sm:$0xff]
    %v945 = vld [vmem:[%s941 + $0x18] sm:$0xff]
    %s946 = scalar_lea.vmem %s13, 1
    %v947 = vld [vmem:[%s946] sm:$0x1]
    %v949 = vperm.slane %v947, 0
    %951 = vmatpush.msra.mxu0 0.0
    %952 = vmatpush.msra.mxu0 0.0
    %953 = vmatpush.msra.mxu0 0.0
    %954 = vmatpush.msra.mxu0 0.0
    %955 = vmatpush.msra.mxu0 0.0
    %956 = vmatpush.msra.mxu0 0.0
    %957 = vmatpush.msra.mxu0 0.0
    %958 = vmatpush.msra.mxu0 0.0
    %959 = vmatpush.msra.mxu0 0.0
    %960 = vmatpush.msra.mxu0 0.0
    %961 = vmatpush.msra.mxu0 0.0
    %962 = vmatpush.msra.mxu0 0.0
    %963 = vmatpush.msra.mxu0 %v945
    %964 = vmatpush.msra.mxu0 %v944
    %965 = vmatpush.msra.mxu0 %v943
    %966 = vmatpush.msra.mxu0 %v942
    %967 = vmatmul.f32.gmra.mxu0 %v911
    %v968 = vpop.f32.mrf.mxu0
    %v969 = vadd.f32 %v949, %v968
    %970 = vmatmul.f32.gmra.mxu0 %v914
    %v971 = vpop.f32.mrf.mxu0
    %v972 = vadd.f32 %v949, %v971
    %973 = vdwg.mxu0
    %s974 = scalar_lea.vmem %s14, 32
    %v975 = vld [vmem:[%s974] sm:$0xff]
    %v976 = vld [vmem:[%s974 + $0x8] sm:$0xff]
    %v977 = vld [vmem:[%s974 + $0x10] sm:$0xff]
    %v978 = vld [vmem:[%s974 + $0x18] sm:$0xff]
    %s979 = scalar_lea.vmem [#allocation8], 1
    %v980 = vld [vmem:[%s979] sm:$0x1]
    %v982 = vperm.slane %v980, 0
    %984 = vmatpush.msra.mxu0 0.0
    %985 = vmatpush.msra.mxu0 0.0
    %986 = vmatpush.msra.mxu0 0.0
    %987 = vmatpush.msra.mxu0 0.0
    %988 = vmatpush.msra.mxu0 0.0
    %989 = vmatpush.msra.mxu0 0.0
    %990 = vmatpush.msra.mxu0 0.0
    %991 = vmatpush.msra.mxu0 0.0
    %992 = vmatpush.msra.mxu0 0.0
    %993 = vmatpush.msra.mxu0 0.0
    %994 = vmatpush.msra.mxu0 0.0
    %995 = vmatpush.msra.mxu0 0.0
    %996 = vmatpush.msra.mxu0 %v978
    %997 = vmatpush.msra.mxu0 %v977
    %998 = vmatpush.msra.mxu0 %v976
    %999 = vmatpush.msra.mxu0 %v975
    %1000 = vmatmul.f32.gmra.mxu0 %v911
    %v1001 = vpop.f32.mrf.mxu0
    %v1002 = vadd.f32 %v982, %v1001
    %1003 = vmatmul.f32.gmra.mxu0 %v914
    %v1004 = vpop.f32.mrf.mxu0
    %v1005 = vadd.f32 %v982, %v1004
    %1006 = vdwg.mxu0
    %1007 = vmatpush.msra.mxu0 0.0
    %1008 = vmatpush.msra.mxu0 0.0
    %1009 = vmatpush.msra.mxu0 0.0
    %1010 = vmatpush.msra.mxu0 0.0
    %1011 = vmatpush.msra.mxu0 0.0
    %1012 = vmatpush.msra.mxu0 0.0
    %1013 = vmatpush.msra.mxu0 0.0
    %1014 = vmatpush.msra.mxu0 0.0
    %1015 = vmatpush.msra.mxu0 0.0
    %1016 = vmatpush.msra.mxu0 0.0
    %1017 = vmatpush.msra.mxu0 0.0
    %1018 = vmatpush.msra.mxu0 0.0
    %1019 = vmatpush.msra.mxu0 0.0
    %1020 = vmatpush.msra.mxu0 0.0
    %1021 = vmatpush.msra.mxu0 %v972
    %1022 = vmatpush.msra.mxu0 %v969
    %1023 = vmatmul.f32.gmra.mxu0 %v407
    %v1024 = vpop.f32.mrf.mxu0
    %v1025 = vadd.f32 0.0, %v1024
    %1026 = vmatmul.f32.gmra.mxu0 %v410
    %v1027 = vpop.f32.mrf.mxu0
    %v1028 = vadd.f32 0.0, %v1027
    %1029 = vmatmul.f32.gmra.mxu0 %v413
    %v1030 = vpop.f32.mrf.mxu0
    %v1031 = vadd.f32 0.0, %v1030
    %1032 = vmatmul.f32.gmra.mxu0 %v416
    %v1033 = vpop.f32.mrf.mxu0
    %v1034 = vadd.f32 0.0, %v1033
    %1035 = vmatmul.f32.gmra.mxu0 %v419
    %v1036 = vpop.f32.mrf.mxu0
    %v1037 = vadd.f32 0.0, %v1036
    %1038 = vmatmul.f32.gmra.mxu0 %v422
    %v1039 = vpop.f32.mrf.mxu0
    %v1040 = vadd.f32 0.0, %v1039
    %1041 = vmatmul.f32.gmra.mxu0 %v425
    %v1042 = vpop.f32.mrf.mxu0
    %v1043 = vadd.f32 0.0, %v1042
    %1044 = vmatmul.f32.gmra.mxu0 %v428
    %v1045 = vpop.f32.mrf.mxu0
    %v1046 = vadd.f32 0.0, %v1045
    %1047 = vdwg.mxu0
    %v1048 = vmul.f32 %v1025, %v296
    %v1049 = vmul.f32 %v1028, %v297
    %v1050 = vmul.f32 %v1031, %v298
    %v1051 = vmul.f32 %v1034, %v299
    %v1052 = vmul.f32 %v1037, %v300
    %v1053 = vmul.f32 %v1040, %v301
    %v1054 = vmul.f32 %v1043, %v302
    %v1055 = vmul.f32 %v1046, %v303
    %1056 = vmatpush.msra.mxu0 0.0
    %1057 = vmatpush.msra.mxu0 0.0
    %1058 = vmatpush.msra.mxu0 0.0
    %1059 = vmatpush.msra.mxu0 0.0
    %1060 = vmatpush.msra.mxu0 0.0
    %1061 = vmatpush.msra.mxu0 0.0
    %1062 = vmatpush.msra.mxu0 0.0
    %1063 = vmatpush.msra.mxu0 0.0
    %1064 = vmatpush.msra.mxu0 0.0
    %1065 = vmatpush.msra.mxu0 0.0
    %1066 = vmatpush.msra.mxu0 0.0
    %1067 = vmatpush.msra.mxu0 0.0
    %1068 = vmatpush.msra.mxu0 0.0
    %1069 = vmatpush.msra.mxu0 0.0
    %1070 = vmatpush.msra.mxu0 %v1005
    %1071 = vmatpush.msra.mxu0 %v1002
    %1072 = vmatmul.f32.gmra.mxu0 %v407
    %v1073 = vpop.f32.mrf.mxu0
    %v1074 = vadd.f32 0.0, %v1073
    %1075 = vmatmul.f32.gmra.mxu0 %v410
    %v1076 = vpop.f32.mrf.mxu0
    %v1077 = vadd.f32 0.0, %v1076
    %1078 = vmatmul.f32.gmra.mxu0 %v413
    %v1079 = vpop.f32.mrf.mxu0
    %v1080 = vadd.f32 0.0, %v1079
    %1081 = vmatmul.f32.gmra.mxu0 %v416
    %v1082 = vpop.f32.mrf.mxu0
    %v1083 = vadd.f32 0.0, %v1082
    %1084 = vmatmul.f32.gmra.mxu0 %v419
    %v1085 = vpop.f32.mrf.mxu0
    %v1086 = vadd.f32 0.0, %v1085
    %1087 = vmatmul.f32.gmra.mxu0 %v422
    %v1088 = vpop.f32.mrf.mxu0
    %v1089 = vadd.f32 0.0, %v1088
    %1090 = vmatmul.f32.gmra.mxu0 %v425
    %v1091 = vpop.f32.mrf.mxu0
    %v1092 = vadd.f32 0.0, %v1091
    %1093 = vmatmul.f32.gmra.mxu0 %v428
    %v1094 = vpop.f32.mrf.mxu0
    %v1095 = vadd.f32 0.0, %v1094
    %1096 = vdwg.mxu0
    %v1097 = vmul.f32 %v1074, %v296
    %v1098 = vmul.f32 %v1077, %v297
    %v1099 = vmul.f32 %v1080, %v298
    %v1100 = vmul.f32 %v1083, %v299
    %v1101 = vmul.f32 %v1086, %v300
    %v1102 = vmul.f32 %v1089, %v301
    %v1103 = vmul.f32 %v1092, %v302
    %v1104 = vmul.f32 %v1095, %v303
    %v1106 = vsel %vm213, %v939, 0
    %v1109 = vsel %vm213, %v940, 0
    %v1112 = vsel %vm213, %v1048, 0
    %v1115 = vsel %vm213, %v1049, 0
    %v1118 = vsel %vm213, %v1050, 0
    %v1121 = vsel %vm213, %v1051, 0
    %v1124 = vsel %vm213, %v1052, 0
    %v1127 = vsel %vm213, %v1053, 0
    %v1130 = vsel %vm213, %v1054, 0
    %v1133 = vsel %vm213, %v1055, 0
    %1135 = vmatpush.xpose.msra.mxu0 0.0
    %1136 = vmatpush.xpose.msra.mxu0 0.0
    %1137 = vmatpush.xpose.msra.mxu0 0.0
    %1138 = vmatpush.xpose.msra.mxu0 0.0
    %1139 = vmatpush.xpose.msra.mxu0 0.0
    %1140 = vmatpush.xpose.msra.mxu0 0.0
    %1141 = vmatpush.xpose.msra.mxu0 0.0
    %1142 = vmatpush.xpose.msra.mxu0 0.0
    %1143 = vmatpush.xpose.msra.mxu0 %v1133
    %1144 = vmatpush.xpose.msra.mxu0 %v1130
    %1145 = vmatpush.xpose.msra.mxu0 %v1127
    %1146 = vmatpush.xpose.msra.mxu0 %v1124
    %1147 = vmatpush.xpose.msra.mxu0 %v1121
    %1148 = vmatpush.xpose.msra.mxu0 %v1118
    %1149 = vmatpush.xpose.msra.mxu0 %v1115
    %1150 = vmatpush.xpose.msra.mxu0 %v1112
    %1151 = vmatmul.f32.gmra.mxu0 %v1106
    %v1152 = vpop.f32.mrf.mxu0
    %v1153 = vadd.f32 %v286, %v1152
    %1154 = vmatmul.f32.gmra.mxu0 %v1109
    %v1155 = vpop.f32.mrf.mxu0
    %v1156 = vadd.f32 %v287, %v1155
    %1157 = vdwg.mxu0
    %v1158 = vsel %vm180, %v1153, -inf
    %1159 = vmax.xlane.f32.xlu0 %v1158
    %v1160 = vpop.xlane.xlu0 %1159
    %v1161 = vsel %vm180, %v1156, -inf
    %1162 = vmax.xlane.f32.xlu0 %v1161
    %v1163 = vpop.xlane.xlu0 %1162
    %v1164 = vsub.f32 %v1153, %v1160
    %v1165 = vsub.f32 %v1156, %v1163
    %v1166 = vmul.f32 %v1164, 1.442695
    %v1167 = vpow.pop %v1166
    %v1168 = vmul.f32 %v1165, 1.442695
    %v1169 = vpow.pop %v1168
    %v1171 = vsel %vm180, %v1167, 0
    %v1174 = vsel %vm180, %v1169, 0
    %1176 = vmatpush.msra.mxu0 0.0
    %1177 = vmatpush.msra.mxu0 0.0
    %1178 = vmatpush.msra.mxu0 0.0
    %1179 = vmatpush.msra.mxu0 0.0
    %1180 = vmatpush.msra.mxu0 0.0
    %1181 = vmatpush.msra.mxu0 0.0
    %1182 = vmatpush.msra.mxu0 0.0
    %1183 = vmatpush.msra.mxu0 0.0
    %1184 = vmatpush.msra.mxu0 %v1104
    %1185 = vmatpush.msra.mxu0 %v1103
    %1186 = vmatpush.msra.mxu0 %v1102
    %1187 = vmatpush.msra.mxu0 %v1101
    %1188 = vmatpush.msra.mxu0 %v1100
    %1189 = vmatpush.msra.mxu0 %v1099
    %1190 = vmatpush.msra.mxu0 %v1098
    %1191 = vmatpush.msra.mxu0 %v1097
    %1192 = vmatmul.f32.gmra.mxu0 %v1171
    %v1193 = vpop.f32.mrf.mxu0
    %v1194 = vadd.f32 0.0, %v1193
    %1195 = vmatmul.f32.gmra.mxu0 %v1174
    %v1196 = vpop.f32.mrf.mxu0
    %v1197 = vadd.f32 0.0, %v1196
    %1198 = vdwg.mxu0
    %1199 = vmatpush.msra.mxu0 0.0
    %1200 = vmatpush.msra.mxu0 0.0
    %1201 = vmatpush.msra.mxu0 0.0
    %1202 = vmatpush.msra.mxu0 0.0
    %1203 = vmatpush.msra.mxu0 0.0
    %1204 = vmatpush.msra.mxu0 0.0
    %1205 = vmatpush.msra.mxu0 0.0
    %1206 = vmatpush.msra.mxu0 0.0
    %1207 = vmatpush.msra.mxu0 %v303
    %1208 = vmatpush.msra.mxu0 %v302
    %1209 = vmatpush.msra.mxu0 %v301
    %1210 = vmatpush.msra.mxu0 %v300
    %1211 = vmatpush.msra.mxu0 %v299
    %1212 = vmatpush.msra.mxu0 %v298
    %1213 = vmatpush.msra.mxu0 %v297
    %1214 = vmatpush.msra.mxu0 %v296
    %1215 = vmatmul.f32.gmra.mxu0 %v1171
    %v1216 = vpop.f32.mrf.mxu0
    %v1217 = vadd.f32 0.0, %v1216
    %1218 = vmatmul.f32.gmra.mxu0 %v1174
    %v1219 = vpop.f32.mrf.mxu0
    %v1220 = vadd.f32 0.0, %v1219
    %1221 = vdwg.mxu0
    %v1222 = vrcp.pop %v1217
    %v1223 = vrcp.pop %v1220
    %v1224 = vmul.f32 %v1194, %v1222
    %v1225 = vmul.f32 %v1197, %v1223
    %s1226 = scalar_lea.vmem %s16, 32
    %v1227 = vld [vmem:[%s1226] sm:$0xff]
    %v1228 = vld [vmem:[%s1226 + $0x8] sm:$0xff]
    %v1229 = vld [vmem:[%s1226 + $0x10] sm:$0xff]
    %v1230 = vld [vmem:[%s1226 + $0x18] sm:$0xff]
    %s1231 = scalar_lea.vmem [#allocation10], 1
    %v1232 = vld [vmem:[%s1231] sm:$0x1]
    %v1234 = vperm.slane %v1232, 0
    %v1237 = vsel %vm213, %v1224, 0
    %v1240 = vsel %vm213, %v1225, 0
    %1242 = vmatpush.msra.mxu0 0.0
    %1243 = vmatpush.msra.mxu0 0.0
    %1244 = vmatpush.msra.mxu0 0.0
    %1245 = vmatpush.msra.mxu0 0.0
    %1246 = vmatpush.msra.mxu0 0.0
    %1247 = vmatpush.msra.mxu0 0.0
    %1248 = vmatpush.msra.mxu0 0.0
    %1249 = vmatpush.msra.mxu0 0.0
    %1250 = vmatpush.msra.mxu0 0.0
    %1251 = vmatpush.msra.mxu0 0.0
    %1252 = vmatpush.msra.mxu0 0.0
    %1253 = vmatpush.msra.mxu0 0.0
    %1254 = vmatpush.msra.mxu0 %v1230
    %1255 = vmatpush.msra.mxu0 %v1229
    %1256 = vmatpush.msra.mxu0 %v1228
    %1257 = vmatpush.msra.mxu0 %v1227
    %1258 = vmatmul.f32.gmra.mxu0 %v1237
    %v1259 = vpop.f32.mrf.mxu0
    %v1260 = vadd.f32 %v1234, %v1259
    %1261 = vmatmul.f32.gmra.mxu0 %v1240
    %v1262 = vpop.f32.mrf.mxu0
    %v1263 = vadd.f32 %v1234, %v1262
    %1264 = vdwg.mxu0
    %v1265 = vadd.f32 %v898, %v1260
    %v1266 = vadd.f32 %v899, %v1263
    %s1267 = scalar_lea.vmem %s18, 2
    %v1268 = vld [vmem:[%s1267] sm:$0x1]
    %s1269 = scalar_lea.vmem %s18, 3
    %v1270 = vld [vmem:[%s1269] sm:$0x1]
    %v1271 = vsel %vm213, %v1265, 0.0
    %1272 = vadd.xlane.f32.xlu0 %v1271
    %v1273 = vpop.xlane.xlu0 %1272
    %v1274 = vsel %vm213, %v1266, 0.0
    %1275 = vadd.xlane.f32.xlu0 %v1274
    %v1276 = vpop.xlane.xlu0 %1275
    %v1277 = vmul.f32 %v1273, %v226
    %v1278 = vmul.f32 %v1276, %v226
    %v1279 = vsub.f32 %v1265, %v1277
    %v1280 = vsub.f32 %v1266, %v1278
    %v1281 = vmul.f32 %v1279, %v1279
    %v1282 = vmul.f32 %v1280, %v1280
    %v1283 = vsel %vm213, %v1281, 0.0
    %1284 = vadd.xlane.f32.xlu0 %v1283
    %v1285 = vpop.xlane.xlu0 %1284
    %v1286 = vsel %vm213, %v1282, 0.0
    %1287 = vadd.xlane.f32.xlu0 %v1286
    %v1288 = vpop.xlane.xlu0 %1287
    %v1289 = vmul.f32 %v1285, %v226
    %v1290 = vmul.f32 %v1288, %v226
    %v1291 = vadd.f32 %v1289, 1e-12
    %v1292 = vadd.f32 %v1290, 1e-12
    %v1293 = vrsqrt.pop %v1291
    %v1294 = vmul.f32 %v1293, %v1291
    %v1295 = vmul.f32 %v1294, %v1293
    %v1296 = vmul.f32 0.5, %v1295
    %v1297 = vsub.f32 1.5, %v1296
    %v1298 = vmul.f32 %v1293, %v1297
    %vm1299 = vweird.f32 %v1291
    %vm1300 = vweird.f32 %v1293
    %vm1301 = vmor %vm1299, %vm1300
    %v1302 = vsel %vm1301, %v1293, %v1298
    %v1303 = vrsqrt.pop %v1292
    %v1304 = vmul.f32 %v1303, %v1292
    %v1305 = vmul.f32 %v1304, %v1303
    %v1306 = vmul.f32 0.5, %v1305
    %v1307 = vsub.f32 1.5, %v1306
    %v1308 = vmul.f32 %v1303, %v1307
    %vm1309 = vweird.f32 %v1292
    %vm1310 = vweird.f32 %v1303
    %vm1311 = vmor %vm1309, %vm1310
    %v1312 = vsel %vm1311, %v1303, %v1308
    %v1313 = vmul.f32 %v1279, %v1302
    %v1314 = vmul.f32 %v1280, %v1312
    %v1316 = vperm.slane %v1268, 0
    %v1318 = vmul.f32 %v1313, %v1316
    %v1319 = vmul.f32 %v1314, %v1316
    %v1321 = vperm.slane %v1270, 0
    %v1323 = vadd.f32 %v1318, %v1321
    %v1324 = vadd.f32 %v1319, %v1321
    %s1325 = scalar_lea.vmem %s19, 32
    %v1326 = vld [vmem:[%s1325] sm:$0xff]
    %v1327 = vld [vmem:[%s1325 + $0x8] sm:$0xff]
    %v1328 = vld [vmem:[%s1325 + $0x10] sm:$0xff]
    %v1329 = vld [vmem:[%s1325 + $0x18] sm:$0xff]
    %s1330 = scalar_lea.vmem %s20, 1
    %v1331 = vld [vmem:[%s1330] sm:$0x1]
    %v1333 = vperm.slane %v1331, 0
    %v1336 = vsel %vm213, %v1323, 0
    %v1339 = vsel %vm213, %v1324, 0
    %1341 = vmatpush.msra.mxu0 0.0
    %1342 = vmatpush.msra.mxu0 0.0
    %1343 = vmatpush.msra.mxu0 0.0
    %1344 = vmatpush.msra.mxu0 0.0
    %1345 = vmatpush.msra.mxu0 0.0
    %1346 = vmatpush.msra.mxu0 0.0
    %1347 = vmatpush.msra.mxu0 0.0
    %1348 = vmatpush.msra.mxu0 0.0
    %1349 = vmatpush.msra.mxu0 0.0
    %1350 = vmatpush.msra.mxu0 0.0
    %1351 = vmatpush.msra.mxu0 0.0
    %1352 = vmatpush.msra.mxu0 0.0
    %1353 = vmatpush.msra.mxu0 %v1329
    %1354 = vmatpush.msra.mxu0 %v1328
    %1355 = vmatpush.msra.mxu0 %v1327
    %1356 = vmatpush.msra.mxu0 %v1326
    %1357 = vmatmul.f32.gmra.mxu0 %v1336
    %v1358 = vpop.f32.mrf.mxu0
    %v1359 = vadd.f32 %v1333, %v1358
    %1360 = vmatmul.f32.gmra.mxu0 %v1339
    %v1361 = vpop.f32.mrf.mxu0
    %v1362 = vadd.f32 %v1333, %v1361
    %1363 = vdwg.mxu0
    %v1364 = vmul.f32 %v1359, 0.5
    %v1365 = vmul.f32 %v1362, 0.5
    %v1366 = vmul.f32 %v1359, 0.044715
    %v1367 = vmul.f32 %v1362, 0.044715
    %v1368 = vmul.f32 %v1366, %v1359
    %v1369 = vmul.f32 %v1367, %v1362
    %v1370 = vmul.f32 %v1368, %v1359
    %v1371 = vmul.f32 %v1369, %v1362
    %v1372 = vadd.f32 %v1359, %v1370
    %v1373 = vadd.f32 %v1362, %v1371
    %v1374 = vmul.f32 %v1372, 0.7978846
    %v1375 = vmul.f32 %v1373, 0.7978846
    %v1376 = vtanh.pop %v1374
    %v1377 = vtanh.pop %v1375
    %v1378 = vadd.f32 %v1376, 1.0
    %v1379 = vadd.f32 %v1377, 1.0
    %v1380 = vmul.f32 %v1364, %v1378
    %v1381 = vmul.f32 %v1365, %v1379
    %s1382 = scalar_lea.vmem %s21, 64
    %v1383 = vld [vmem:[%s1382] sm:$0xff]
    %v1384 = vld [vmem:[%s1382 + $0x8] sm:$0xff]
    %v1385 = vld [vmem:[%s1382 + $0x10] sm:$0xff]
    %v1386 = vld [vmem:[%s1382 + $0x18] sm:$0xff]
    %v1387 = vld [vmem:[%s1382 + $0x20] sm:$0xff]
    %v1388 = vld [vmem:[%s1382 + $0x28] sm:$0xff]
    %v1389 = vld [vmem:[%s1382 + $0x30] sm:$0xff]
    %v1390 = vld [vmem:[%s1382 + $0x38] sm:$0xff]
    %s1391 = scalar_lea.vmem %s22, 1
    %v1392 = vld [vmem:[%s1391] sm:$0x1]
    %v1394 = vperm.slane %v1392, 0
    %v1397 = vsel %vm180, %v1380, 0
    %v1400 = vsel %vm180, %v1381, 0
    %1402 = vmatpush.msra.mxu0 0.0
    %1403 = vmatpush.msra.mxu0 0.0
    %1404 = vmatpush.msra.mxu0 0.0
    %1405 = vmatpush.msra.mxu0 0.0
    %1406 = vmatpush.msra.mxu0 0.0
    %1407 = vmatpush.msra.mxu0 0.0
    %1408 = vmatpush.msra.mxu0 0.0
    %1409 = vmatpush.msra.mxu0 0.0
    %1410 = vmatpush.msra.mxu0 %v1390
    %1411 = vmatpush.msra.mxu0 %v1389
    %1412 = vmatpush.msra.mxu0 %v1388
    %1413 = vmatpush.msra.mxu0 %v1387
    %1414 = vmatpush.msra.mxu0 %v1386
    %1415 = vmatpush.msra.mxu0 %v1385
    %1416 = vmatpush.msra.mxu0 %v1384
    %1417 = vmatpush.msra.mxu0 %v1383
    %1418 = vmatmul.f32.gmra.mxu0 %v1397
    %v1419 = vpop.f32.mrf.mxu0
    %v1420 = vadd.f32 %v1394, %v1419
    %1421 = vmatmul.f32.gmra.mxu0 %v1400
    %v1422 = vpop.f32.mrf.mxu0
    %v1423 = vadd.f32 %v1394, %v1422
    %1424 = vdwg.mxu0
    %v1425 = vadd.f32 %v1323, %v1420
    %v1426 = vadd.f32 %v1324, %v1423
    %s1427 = scalar_lea.vmem %s23, 2
    %v1428 = vld [vmem:[%s1427] sm:$0x1]
    %s1429 = scalar_lea.vmem %s23, 3
    %v1430 = vld [vmem:[%s1429] sm:$0x1]
    %v1431 = vsel %vm213, %v1425, 0.0
    %1432 = vadd.xlane.f32.xlu0 %v1431
    %v1433 = vpop.xlane.xlu0 %1432
    %v1434 = vsel %vm213, %v1426, 0.0
    %1435 = vadd.xlane.f32.xlu0 %v1434
    %v1436 = vpop.xlane.xlu0 %1435
    %v1437 = vmul.f32 %v1433, %v226
    %v1438 = vmul.f32 %v1436, %v226
    %v1439 = vsub.f32 %v1425, %v1437
    %v1440 = vsub.f32 %v1426, %v1438
    %v1441 = vmul.f32 %v1439, %v1439
    %v1442 = vmul.f32 %v1440, %v1440
    %v1443 = vsel %vm213, %v1441, 0.0
    %1444 = vadd.xlane.f32.xlu0 %v1443
    %v1445 = vpop.xlane.xlu0 %1444
    %v1446 = vsel %vm213, %v1442, 0.0
    %1447 = vadd.xlane.f32.xlu0 %v1446
    %v1448 = vpop.xlane.xlu0 %1447
    %v1449 = vmul.f32 %v1445, %v226
    %v1450 = vmul.f32 %v1448, %v226
    %v1451 = vadd.f32 %v1449, 1e-12
    %v1452 = vadd.f32 %v1450, 1e-12
    %v1453 = vrsqrt.pop %v1451
    %v1454 = vmul.f32 %v1453, %v1451
    %v1455 = vmul.f32 %v1454, %v1453
    %v1456 = vmul.f32 0.5, %v1455
    %v1457 = vsub.f32 1.5, %v1456
    %v1458 = vmul.f32 %v1453, %v1457
    %vm1459 = vweird.f32 %v1451
    %vm1460 = vweird.f32 %v1453
    %vm1461 = vmor %vm1459, %vm1460
    %v1462 = vsel %vm1461, %v1453, %v1458
    %v1463 = vrsqrt.pop %v1452
    %v1464 = vmul.f32 %v1463, %v1452
    %v1465 = vmul.f32 %v1464, %v1463
    %v1466 = vmul.f32 0.5, %v1465
    %v1467 = vsub.f32 1.5, %v1466
    %v1468 = vmul.f32 %v1463, %v1467
    %vm1469 = vweird.f32 %v1452
    %vm1470 = vweird.f32 %v1463
    %vm1471 = vmor %vm1469, %vm1470
    %v1472 = vsel %vm1471, %v1463, %v1468
    %v1473 = vmul.f32 %v1439, %v1462
    %v1474 = vmul.f32 %v1440, %v1472
    %v1476 = vperm.slane %v1428, 0
    %v1478 = vmul.f32 %v1473, %v1476
    %v1479 = vmul.f32 %v1474, %v1476
    %v1481 = vperm.slane %v1430, 0
    %v1483 = vadd.f32 %v1478, %v1481
    %v1484 = vadd.f32 %v1479, %v1481
    %v1485 = vld [vmem:[%s9] sm:$0x3]
    %v1487 = vsel %vm405, %v1485, 0
    %1489 = vmatpush.msra.mxu0 0.0
    %1490 = vmatpush.msra.mxu0 0.0
    %1491 = vmatpush.msra.mxu0 0.0
    %1492 = vmatpush.msra.mxu0 0.0
    %1493 = vmatpush.msra.mxu0 0.0
    %1494 = vmatpush.msra.mxu0 0.0
    %1495 = vmatpush.msra.mxu0 0.0
    %1496 = vmatpush.msra.mxu0 0.0
    %1497 = vmatpush.msra.mxu0 0.0
    %1498 = vmatpush.msra.mxu0 0.0
    %1499 = vmatpush.msra.mxu0 0.0
    %1500 = vmatpush.msra.mxu0 0.0
    %1501 = vmatpush.msra.mxu0 0.0
    %1502 = vmatpush.msra.mxu0 0.0
    %1503 = vmatpush.msra.mxu0 %v1484
    %1504 = vmatpush.msra.mxu0 %v1483
    %1505 = vmatmul.f32.gmra.mxu0 %v1487
    %v1506 = vpop.f32.mrf.mxu0
    %v1507 = vadd.f32 0.0, %v1506
    %1508 = vdwg.mxu0
    %vm1509 = vcmask 254976
    %1510 = vst.msk [vmem:[#allocation11] sm:$0x3] %vm1509, %v1507
    // Predicated region
    $region118: #{tpu_custom_call.1} parent=1 // pred_check
      _
    $region119: #{tpu_custom_call.1} parent=1 // pred_check_branch
      %1512 = sbr.rel (0) target = $region121
    $region120: #{tpu_custom_call.1} parent=1 // pred_region
      %1514 = vsyncadd [#allocation4], 0
      %s1516 = sshll.u32 [#allocation11], 4
      %s1517 = int_to_ptr.vmem [resolvable:$true] %s1516
      %s1518 = sshll.u32 %s24, 4
      %s1519 = int_to_ptr.hbm [resolvable:$true] %s1518
      %1521 = dma.vmem_to_hbm [thread:$0]  %s1517, 32, %s1519, [#allocation4]
    $region121: #{tpu_custom_call.1} parent=1 // pred_fallthru
      _
    // Predicated region
    $region122: #{tpu_custom_call.1} parent=1 // pred_check
      _
    $region123: #{tpu_custom_call.1} parent=1 // pred_check_branch
      %1523 = sbr.rel (0) target = $region125
    $region124: #{tpu_custom_call.1} parent=1 // pred_region
      %1525 = dma.done [#allocation4], 32
    $region125: #{tpu_custom_call.1} parent=1 // pred_fallthru
      _
    %1526 = vsyncpa [#allocation3], 1
    %1527 = vsyncpa [#allocation6], 1
    %1528 = vsyncpa [#allocation9], 1
    %1529 = vsyncpa [#allocation4], 1

</llo_original>
